<compile_context>
chip_gen: v7x
topology: tpu7x:2x2x1
jax: 0.10.0
libtpu: 0.0.40
codegen_flags: <defaults>
</compile_context>

<pallas_src>
import functools

import numpy as np
import jax
import jax.numpy as jnp
from jax.experimental import pallas as pl
from jax.experimental.pallas import tpu as pltpu


def _round_up(x, m):
    return (x + m - 1) // m * m


# ----------------------------------------------------------------------------
# Fused kernel: Conv2d (stride=1) + BatchNorm (inference) + ReLU
# ----------------------------------------------------------------------------
def basic_conv_kernel(x_ref, w_ref, scale_ref, shift_ref, o_ref, *, offsets, l_out):
    """One batch block.

    x_ref     : (Bt, Cin_p, Lin)   zero-padded, flattened padded-frame input
    w_ref     : (T, Cout_p, Cin_p) conv weight, one (Cout, Cin) matrix per tap
    scale_ref : (Cout_p, 1)        gamma / sqrt(running_var + eps)
    shift_ref : (Cout_p, 1)        beta - running_mean * scale
    o_ref     : (Bt, Cout_p, Lout) output in padded-frame flat coordinates
    """
    bt = x_ref.shape[0]

    # Loop-invariant loads hoisted out of the batch/tap loops (perf review).
    scale = scale_ref[...]                                   # (Cout, 1)
    shift = shift_ref[...]                                   # (Cout, 1)

    for b in range(bt):
        acc = None
        for t, d in enumerate(offsets):
            # Tap (kh, kw) == static-offset contiguous lane slice of x_flat.
            patch = x_ref[b, :, d:d + l_out]                 # (Cin, Lout)
            part = jnp.dot(w_ref[t], patch,
                           preferred_element_type=jnp.float32)  # (Cout, Lout)
            acc = part if acc is None else acc + part
        # Fused BatchNorm (inference semantics) + ReLU, lane-dense store.
        o_ref[b] = jnp.maximum(acc * scale + shift, 0.0)


# ----------------------------------------------------------------------------
# Host glue
# ----------------------------------------------------------------------------
def basic_conv_forward(x, params, *, stride=1, padding=1, dilation=1, eps=1e-5):
    # TODO(synk): stride > 1 and groups > 1 are not implemented in this kernel;
    # the module's common config (3x3 / stride 1 / pad 1 / groups 1) is covered.
    assert stride == 1
    B, Cin, H, W = x.shape
    w = params['conv_w']                                      # (Cout, Cin, KH, KW)
    Cout, Cin_w, KH, KW = w.shape
    assert Cin_w == Cin

    Hp, Wp = H + 2 * padding, W + 2 * padding
    Hout = Hp - dilation * (KH - 1)
    Wout = Wp - dilation * (KW - 1)

    # Flat-index shift of each kernel tap in the padded frame.
    offsets = tuple(kh * dilation * Wp + kw * dilation
                    for kh in range(KH) for kw in range(KW))
    l_out = _round_up((Hout - 1) * Wp + Wout, 128)            # lane-dense output
    l_in = _round_up(l_out + max(offsets), 128)

    # Host-side zero pad + flatten + lane pad (layout plumbing only).
    x_pad = jnp.pad(x, ((0, 0), (0, 0), (padding, padding), (padding, padding)))
    x_flat = x_pad.reshape(B, Cin, Hp * Wp).astype(jnp.float32)
    x_flat = jnp.pad(x_flat, ((0, 0), (0, 0), (0, l_in - Hp * Wp)))

    # One (Cout, Cin) weight matrix per kernel tap, tap-major.
    w_taps = jnp.transpose(w, (2, 3, 0, 1)).reshape(KH * KW, Cout, Cin)

    # Fold BatchNorm (inference) into a per-channel scale / shift.
    scale = params['bn_gamma'] / jnp.sqrt(params['bn_var'] + eps)
    shift = params['bn_beta'] - params['bn_mean'] * scale
    if params.get('conv_b') is not None:
        shift = shift + params['conv_b'] * scale

    # Pad channels to multiples of 8 (sublane-aligned MXU contraction).
    cin_p = _round_up(Cin, 8)
    cout_p = _round_up(Cout, 8)
    if cin_p != Cin:
        x_flat = jnp.pad(x_flat, ((0, 0), (0, cin_p - Cin), (0, 0)))
        w_taps = jnp.pad(w_taps, ((0, 0), (0, 0), (0, cin_p - Cin)))
    if cout_p != Cout:
        w_taps = jnp.pad(w_taps, ((0, 0), (0, cout_p - Cout), (0, 0)))
        scale = jnp.pad(scale, (0, cout_p - Cout))
        shift = jnp.pad(shift, (0, cout_p - Cout))
    w_taps = w_taps.astype(jnp.float32)
    scale = scale.reshape(cout_p, 1).astype(jnp.float32)
    shift = shift.reshape(cout_p, 1).astype(jnp.float32)

    # Batch blocking: amortize per-grid-step overhead, but keep >= 2 grid steps
    # when possible so both v7x TensorCores get work on the "parallel" axis.
    bt = 1
    for cand in (8, 4, 2):
        if B % cand == 0 and B // cand >= 2:
            bt = cand
            break

    out_flat = pl.pallas_call(
        functools.partial(basic_conv_kernel, offsets=offsets, l_out=l_out),
        out_shape=jax.ShapeDtypeStruct((B, cout_p, l_out), jnp.float32),
        grid=(B // bt,),
        in_specs=[
            pl.BlockSpec((bt, cin_p, l_in), lambda b: (b, 0, 0)),
            pl.BlockSpec((KH * KW, cout_p, cin_p), lambda b: (0, 0, 0)),
            pl.BlockSpec((cout_p, 1), lambda b: (0, 0)),
            pl.BlockSpec((cout_p, 1), lambda b: (0, 0)),
        ],
        out_specs=pl.BlockSpec((bt, cout_p, l_out), lambda b: (b, 0, 0)),
        compiler_params=pltpu.CompilerParams(
            dimension_semantics=("parallel",)),
    )(x_flat, w_taps, scale, shift)

    # Extract valid output pixels from padded-frame flat coordinates (host-side).
    idx = (jnp.arange(Hout)[:, None] * Wp + jnp.arange(Wout)[None, :]).reshape(-1)
    out = jnp.take(out_flat[:, :Cout], idx, axis=2)
    return out.reshape(B, Cout, Hout, Wout)


# ----------------------------------------------------------------------------
# Pure-JAX reference (same math) for sanity checking.
# ----------------------------------------------------------------------------
def basic_conv_reference(x, params, *, stride=1, padding=1, dilation=1, eps=1e-5):
    out = jax.lax.conv_general_dilated(
        x, params['conv_w'],
        window_strides=(stride, stride),
        padding=((padding, padding), (padding, padding)),
        rhs_dilation=(dilation, dilation),
        dimension_numbers=('NCHW', 'OIHW', 'NCHW'),
        precision=jax.lax.Precision.HIGHEST)
    if params.get('conv_b') is not None:
        out = out + params['conv_b'][None, :, None, None]
    scale = params['bn_gamma'] / jnp.sqrt(params['bn_var'] + eps)
    shift = params['bn_beta'] - params['bn_mean'] * scale
    out = out * scale[None, :, None, None] + shift[None, :, None, None]
    return jnp.maximum(out, 0.0)


def init_params(key, cin, cout, k):
    ks = jax.random.split(key, 5)
    return dict(
        conv_w=0.2 * jax.random.normal(ks[0], (cout, cin, k, k), jnp.float32),
        conv_b=None,   # BasicConv default: bias=False
        bn_gamma=1.0 + 0.1 * jax.random.normal(ks[1], (cout,), jnp.float32),
        bn_beta=0.1 * jax.random.normal(ks[2], (cout,), jnp.float32),
        # TODO(synk): BatchNorm2d training-mode batch statistics and the
        # running-stat momentum update are stateful; inference (running-stats)
        # semantics are implemented here.
        bn_mean=0.1 * jax.random.normal(ks[3], (cout,), jnp.float32),
        bn_var=0.5 + jax.random.uniform(ks[4], (cout,), jnp.float32),
    )


if __name__ == "__main__":
    B, Cin, Cout, H, W, K = 2, 4, 8, 16, 16, 3
    key = jax.random.PRNGKey(0)
    kx, kp = jax.random.split(key)
    x = jax.random.normal(kx, (B, Cin, H, W), jnp.float32)
    params = init_params(kp, Cin, Cout, K)

    out = jax.block_until_ready(basic_conv_forward(x, params))
    ref = jax.block_until_ready(basic_conv_reference(x, params))

    assert out.shape == (B, Cout, H, W)
    np.testing.assert_allclose(np.asarray(out), np.asarray(ref),
                               rtol=1e-2, atol=1e-2)
    print("KERNEL_OK")
</pallas_src>

<mosaic_0001>
module attributes {stable_mosaic.version = 11 : i64} {
  func.func @basic_conv_kernel(%arg0: i32, %arg1: memref<1x8x512xf32, #tpu.memory_space<vmem>>, %arg2: memref<9x8x8xf32, #tpu.memory_space<vmem>>, %arg3: memref<8x1xf32, #tpu.memory_space<vmem>>, %arg4: memref<8x1xf32, #tpu.memory_space<vmem>>, %arg5: memref<1x8x384xf32, #tpu.memory_space<vmem>>) attributes {dimension_semantics = [#tpu.dimension_semantics<parallel>], iteration_bounds = array<i64: 2>, scalar_prefetch = 0 : i64, scratch_operands = 0 : i64, tpu.core_type = #tpu.core_type<tc>, window_params = [{transform_indices = @transform_0, window_bounds = array<i64: 1, 8, 512>}, {pipeline_mode = #tpu.pipeline_mode<synchronous>, transform_indices = @transform_1, window_bounds = array<i64: 9, 8, 8>}, {pipeline_mode = #tpu.pipeline_mode<synchronous>, transform_indices = @transform_2, window_bounds = array<i64: 8, 1>}, {pipeline_mode = #tpu.pipeline_mode<synchronous>, transform_indices = @transform_3, window_bounds = array<i64: 8, 1>}, {transform_indices = @transform_4, window_bounds = array<i64: 1, 8, 384>}]} {
    %c0 = arith.constant 0 : index
    %c0_0 = arith.constant 0 : index
    %0 = vector.load %arg3[%c0, %c0_0] : memref<8x1xf32, #tpu.memory_space<vmem>>, vector<8x1xf32>
    %c0_1 = arith.constant 0 : index
    %c0_2 = arith.constant 0 : index
    %1 = vector.load %arg4[%c0_1, %c0_2] : memref<8x1xf32, #tpu.memory_space<vmem>>, vector<8x1xf32>
    %c0_3 = arith.constant 0 : index
    %c0_4 = arith.constant 0 : index
    %c0_5 = arith.constant 0 : index
    %2 = vector.load %arg1[%c0_3, %c0_4, %c0_5] : memref<1x8x512xf32, #tpu.memory_space<vmem>>, vector<1x8x384xf32>
    %3 = vector.shape_cast %2 : vector<1x8x384xf32> to vector<8x384xf32>
    %c0_6 = arith.constant 0 : index
    %c0_7 = arith.constant 0 : index
    %c0_8 = arith.constant 0 : index
    %4 = vector.load %arg2[%c0_6, %c0_7, %c0_8] : memref<9x8x8xf32, #tpu.memory_space<vmem>>, vector<1x8x8xf32>
    %5 = vector.shape_cast %4 : vector<1x8x8xf32> to vector<8x8xf32>
    %cst = arith.constant dense<0.000000e+00> : vector<8x384xf32>
    %6 = tpu.matmul %5, %3, %cst {dimension_numbers = #tpu.dot_dimension_numbers<[1], [0], [0], [1], [0, 0, 1, 1], [], []>} : vector<8x8xf32>, vector<8x384xf32>, vector<8x384xf32> -> vector<8x384xf32>
    %c0_9 = arith.constant 0 : index
    %c0_10 = arith.constant 0 : index
    %c1 = arith.constant 1 : index
    %7 = vector.load %arg1[%c0_9, %c0_10, %c1] : memref<1x8x512xf32, #tpu.memory_space<vmem>>, vector<1x8x384xf32>
    %8 = vector.shape_cast %7 : vector<1x8x384xf32> to vector<8x384xf32>
    %c1_11 = arith.constant 1 : index
    %c0_12 = arith.constant 0 : index
    %c0_13 = arith.constant 0 : index
    %9 = vector.load %arg2[%c1_11, %c0_12, %c0_13] : memref<9x8x8xf32, #tpu.memory_space<vmem>>, vector<1x8x8xf32>
    %10 = vector.shape_cast %9 : vector<1x8x8xf32> to vector<8x8xf32>
    %cst_14 = arith.constant dense<0.000000e+00> : vector<8x384xf32>
    %11 = tpu.matmul %10, %8, %cst_14 {dimension_numbers = #tpu.dot_dimension_numbers<[1], [0], [0], [1], [0, 0, 1, 1], [], []>} : vector<8x8xf32>, vector<8x384xf32>, vector<8x384xf32> -> vector<8x384xf32>
    %12 = arith.addf %6, %11 : vector<8x384xf32>
    %c0_15 = arith.constant 0 : index
    %c0_16 = arith.constant 0 : index
    %c2 = arith.constant 2 : index
    %13 = vector.load %arg1[%c0_15, %c0_16, %c2] : memref<1x8x512xf32, #tpu.memory_space<vmem>>, vector<1x8x384xf32>
    %14 = vector.shape_cast %13 : vector<1x8x384xf32> to vector<8x384xf32>
    %c2_17 = arith.constant 2 : index
    %c0_18 = arith.constant 0 : index
    %c0_19 = arith.constant 0 : index
    %15 = vector.load %arg2[%c2_17, %c0_18, %c0_19] : memref<9x8x8xf32, #tpu.memory_space<vmem>>, vector<1x8x8xf32>
    %16 = vector.shape_cast %15 : vector<1x8x8xf32> to vector<8x8xf32>
    %cst_20 = arith.constant dense<0.000000e+00> : vector<8x384xf32>
    %17 = tpu.matmul %16, %14, %cst_20 {dimension_numbers = #tpu.dot_dimension_numbers<[1], [0], [0], [1], [0, 0, 1, 1], [], []>} : vector<8x8xf32>, vector<8x384xf32>, vector<8x384xf32> -> vector<8x384xf32>
    %18 = arith.addf %12, %17 : vector<8x384xf32>
    %c0_21 = arith.constant 0 : index
    %c0_22 = arith.constant 0 : index
    %c18 = arith.constant 18 : index
    %19 = vector.load %arg1[%c0_21, %c0_22, %c18] : memref<1x8x512xf32, #tpu.memory_space<vmem>>, vector<1x8x384xf32>
    %20 = vector.shape_cast %19 : vector<1x8x384xf32> to vector<8x384xf32>
    %c3 = arith.constant 3 : index
    %c0_23 = arith.constant 0 : index
    %c0_24 = arith.constant 0 : index
    %21 = vector.load %arg2[%c3, %c0_23, %c0_24] : memref<9x8x8xf32, #tpu.memory_space<vmem>>, vector<1x8x8xf32>
    %22 = vector.shape_cast %21 : vector<1x8x8xf32> to vector<8x8xf32>
    %cst_25 = arith.constant dense<0.000000e+00> : vector<8x384xf32>
    %23 = tpu.matmul %22, %20, %cst_25 {dimension_numbers = #tpu.dot_dimension_numbers<[1], [0], [0], [1], [0, 0, 1, 1], [], []>} : vector<8x8xf32>, vector<8x384xf32>, vector<8x384xf32> -> vector<8x384xf32>
    %24 = arith.addf %18, %23 : vector<8x384xf32>
    %c0_26 = arith.constant 0 : index
    %c0_27 = arith.constant 0 : index
    %c19 = arith.constant 19 : index
    %25 = vector.load %arg1[%c0_26, %c0_27, %c19] : memref<1x8x512xf32, #tpu.memory_space<vmem>>, vector<1x8x384xf32>
    %26 = vector.shape_cast %25 : vector<1x8x384xf32> to vector<8x384xf32>
    %c4 = arith.constant 4 : index
    %c0_28 = arith.constant 0 : index
    %c0_29 = arith.constant 0 : index
    %27 = vector.load %arg2[%c4, %c0_28, %c0_29] : memref<9x8x8xf32, #tpu.memory_space<vmem>>, vector<1x8x8xf32>
    %28 = vector.shape_cast %27 : vector<1x8x8xf32> to vector<8x8xf32>
    %cst_30 = arith.constant dense<0.000000e+00> : vector<8x384xf32>
    %29 = tpu.matmul %28, %26, %cst_30 {dimension_numbers = #tpu.dot_dimension_numbers<[1], [0], [0], [1], [0, 0, 1, 1], [], []>} : vector<8x8xf32>, vector<8x384xf32>, vector<8x384xf32> -> vector<8x384xf32>
    %30 = arith.addf %24, %29 : vector<8x384xf32>
    %c0_31 = arith.constant 0 : index
    %c0_32 = arith.constant 0 : index
    %c20 = arith.constant 20 : index
    %31 = vector.load %arg1[%c0_31, %c0_32, %c20] : memref<1x8x512xf32, #tpu.memory_space<vmem>>, vector<1x8x384xf32>
    %32 = vector.shape_cast %31 : vector<1x8x384xf32> to vector<8x384xf32>
    %c5 = arith.constant 5 : index
    %c0_33 = arith.constant 0 : index
    %c0_34 = arith.constant 0 : index
    %33 = vector.load %arg2[%c5, %c0_33, %c0_34] : memref<9x8x8xf32, #tpu.memory_space<vmem>>, vector<1x8x8xf32>
    %34 = vector.shape_cast %33 : vector<1x8x8xf32> to vector<8x8xf32>
    %cst_35 = arith.constant dense<0.000000e+00> : vector<8x384xf32>
    %35 = tpu.matmul %34, %32, %cst_35 {dimension_numbers = #tpu.dot_dimension_numbers<[1], [0], [0], [1], [0, 0, 1, 1], [], []>} : vector<8x8xf32>, vector<8x384xf32>, vector<8x384xf32> -> vector<8x384xf32>
    %36 = arith.addf %30, %35 : vector<8x384xf32>
    %c0_36 = arith.constant 0 : index
    %c0_37 = arith.constant 0 : index
    %c36 = arith.constant 36 : index
    %37 = vector.load %arg1[%c0_36, %c0_37, %c36] : memref<1x8x512xf32, #tpu.memory_space<vmem>>, vector<1x8x384xf32>
    %38 = vector.shape_cast %37 : vector<1x8x384xf32> to vector<8x384xf32>
    %c6 = arith.constant 6 : index
    %c0_38 = arith.constant 0 : index
    %c0_39 = arith.constant 0 : index
    %39 = vector.load %arg2[%c6, %c0_38, %c0_39] : memref<9x8x8xf32, #tpu.memory_space<vmem>>, vector<1x8x8xf32>
    %40 = vector.shape_cast %39 : vector<1x8x8xf32> to vector<8x8xf32>
    %cst_40 = arith.constant dense<0.000000e+00> : vector<8x384xf32>
    %41 = tpu.matmul %40, %38, %cst_40 {dimension_numbers = #tpu.dot_dimension_numbers<[1], [0], [0], [1], [0, 0, 1, 1], [], []>} : vector<8x8xf32>, vector<8x384xf32>, vector<8x384xf32> -> vector<8x384xf32>
    %42 = arith.addf %36, %41 : vector<8x384xf32>
    %c0_41 = arith.constant 0 : index
    %c0_42 = arith.constant 0 : index
    %c37 = arith.constant 37 : index
    %43 = vector.load %arg1[%c0_41, %c0_42, %c37] : memref<1x8x512xf32, #tpu.memory_space<vmem>>, vector<1x8x384xf32>
    %44 = vector.shape_cast %43 : vector<1x8x384xf32> to vector<8x384xf32>
    %c7 = arith.constant 7 : index
    %c0_43 = arith.constant 0 : index
    %c0_44 = arith.constant 0 : index
    %45 = vector.load %arg2[%c7, %c0_43, %c0_44] : memref<9x8x8xf32, #tpu.memory_space<vmem>>, vector<1x8x8xf32>
    %46 = vector.shape_cast %45 : vector<1x8x8xf32> to vector<8x8xf32>
    %cst_45 = arith.constant dense<0.000000e+00> : vector<8x384xf32>
    %47 = tpu.matmul %46, %44, %cst_45 {dimension_numbers = #tpu.dot_dimension_numbers<[1], [0], [0], [1], [0, 0, 1, 1], [], []>} : vector<8x8xf32>, vector<8x384xf32>, vector<8x384xf32> -> vector<8x384xf32>
    %48 = arith.addf %42, %47 : vector<8x384xf32>
    %c0_46 = arith.constant 0 : index
    %c0_47 = arith.constant 0 : index
    %c38 = arith.constant 38 : index
    %49 = vector.load %arg1[%c0_46, %c0_47, %c38] : memref<1x8x512xf32, #tpu.memory_space<vmem>>, vector<1x8x384xf32>
    %50 = vector.shape_cast %49 : vector<1x8x384xf32> to vector<8x384xf32>
    %c8 = arith.constant 8 : index
    %c0_48 = arith.constant 0 : index
    %c0_49 = arith.constant 0 : index
    %51 = vector.load %arg2[%c8, %c0_48, %c0_49] : memref<9x8x8xf32, #tpu.memory_space<vmem>>, vector<1x8x8xf32>
    %52 = vector.shape_cast %51 : vector<1x8x8xf32> to vector<8x8xf32>
    %cst_50 = arith.constant dense<0.000000e+00> : vector<8x384xf32>
    %53 = tpu.matmul %52, %50, %cst_50 {dimension_numbers = #tpu.dot_dimension_numbers<[1], [0], [0], [1], [0, 0, 1, 1], [], []>} : vector<8x8xf32>, vector<8x384xf32>, vector<8x384xf32> -> vector<8x384xf32>
    %54 = arith.addf %48, %53 : vector<8x384xf32>
    %55 = vector.broadcast %0 : vector<8x1xf32> to vector<8x384xf32>
    %56 = arith.mulf %54, %55 : vector<8x384xf32>
    %57 = vector.broadcast %1 : vector<8x1xf32> to vector<8x384xf32>
    %58 = arith.addf %56, %57 : vector<8x384xf32>
    %cst_51 = arith.constant 0.000000e+00 : f32
    %59 = vector.broadcast %cst_51 : f32 to vector<8x384xf32>
    %60 = arith.maximumf %58, %59 : vector<8x384xf32>
    %c0_52 = arith.constant 0 : index
    %c0_53 = arith.constant 0 : index
    %c0_54 = arith.constant 0 : index
    %61 = vector.load %arg5[%c0_52, %c0_53, %c0_54] : memref<1x8x384xf32, #tpu.memory_space<vmem>>, vector<1x8x384xf32>
    %62 = vector.shape_cast %61 : vector<1x8x384xf32> to vector<8x384xf32>
    %63 = vector.shape_cast %60 : vector<8x384xf32> to vector<1x8x384xf32>
    tpu.vector_store %arg5[%c0_52, %c0_53, %c0_54], %63 {strides = array<i32>} : memref<1x8x384xf32, #tpu.memory_space<vmem>>, vector<1x8x384xf32>,
    return
  }
  func.func @transform_0(%arg0: i32) -> (i32, i32, i32) {
    %c0_i32 = arith.constant 0 : i32
    %c0_i32_0 = arith.constant 0 : i32
    %c0_i32_1 = arith.constant 0 : i32
    return %arg0, %c0_i32, %c0_i32_0 : i32, i32, i32
  }
  func.func @transform_1(%arg0: i32) -> (i32, i32, i32) {
    %c0_i32 = arith.constant 0 : i32
    %c0_i32_0 = arith.constant 0 : i32
    %c0_i32_1 = arith.constant 0 : i32
    %c0_i32_2 = arith.constant 0 : i32
    return %c0_i32, %c0_i32_0, %c0_i32_1 : i32, i32, i32
  }
  func.func @transform_2(%arg0: i32) -> (i32, i32) {
    %c0_i32 = arith.constant 0 : i32
    %c0_i32_0 = arith.constant 0 : i32
    %c0_i32_1 = arith.constant 0 : i32
    return %c0_i32, %c0_i32_0 : i32, i32
  }
  func.func @transform_3(%arg0: i32) -> (i32, i32) {
    %c0_i32 = arith.constant 0 : i32
    %c0_i32_0 = arith.constant 0 : i32
    %c0_i32_1 = arith.constant 0 : i32
    return %c0_i32, %c0_i32_0 : i32, i32
  }
  func.func @transform_4(%arg0: i32) -> (i32, i32, i32) {
    %c0_i32 = arith.constant 0 : i32
    %c0_i32_0 = arith.constant 0 : i32
    %c0_i32_1 = arith.constant 0 : i32
    return %arg0, %c0_i32, %c0_i32_0 : i32, i32, i32
  }
}

</mosaic_0001>

<llo_original>
// kernel: tpu_custom_call.1
$region0: #{tpu_custom_call.1}
  #allocation0 [shape = 'u32[]', space=smem, size = 0x4, offset = 0x4, fixed_abs, tag = 'smem constant byte address 0x4 - core index']
  #allocation1 [shape = 'u32[144,128]{1,0:T(1,128)}', space=vmem, size = 0x12000, scoped, tag = 'internal scratch']
  %s0 = inlined_call_operand.vmem [shape: f32[2,8,512], index: 0, kind: input, shape index: {}]
  %s1 = inlined_call_operand.vmem [shape: f32[9,8,8], index: 1, kind: input, shape index: {}]
  %s2 = inlined_call_operand.vmem [shape: f32[8,1], index: 2, kind: input, shape index: {}]
  %s3 = inlined_call_operand.vmem [shape: f32[8,1], index: 3, kind: input, shape index: {}]
  %s4 = inlined_call_operand.hbm [shape: f32[2,8,384], index: 4, kind: output, shape index: {}]
  %s5 = sld [smem:[#allocation0]]
  $region49: #{tpu_custom_call.1} parent=0
    _
  %s7 = ssub.s32 1, %s5
  %s8 = scalar_select 0, %s7, %s5
  $region1: #{tpu_custom_call.1} parent=0
    #allocation2 [shape = 'u8[24576]{0}', space=vmem, size = 0x6000, scoped, tag = 'output window, operand 0']
    #allocation3 [shape = 's32[2]{0}', space=sflag, size = 0x8, scoped, tag = 'scoped memory for tpu_custom_call.1']
    %9 = vsyncpa [#allocation3], 0
    %s10 = scalar_lea.sflag [#allocation3], 1
    %11 = vsyncpa %s10, 0
    loop: start=0, step=1, limit=4
    $region2: #{tpu_custom_call.1} parent=1 // loop_pre_header
      _
    $region3: #{tpu_custom_call.1} parent=1 // loop_header
      %s13 = sphi 0, %s17
      %p14 = scmp.ge.s32.totalorder %s13, 4
      %s23 = sphi 0, %s25
      %s26 = sphi 0, %s23
      %s27 = sphi 0, %s26
      %s43 = sphi 0, %s27
      %s47 = sphi 0, %s47
      %s49 = sphi 0, %s47
      %s50 = sphi 0, %s49
      %s64 = sphi 0, %s50
      %s68 = sphi 0, %s68
      %s70 = sphi 0, %s68
      %s71 = sphi 0, %s70
      %s85 = sphi 0, %s71
      %s89 = sphi 0, %s89
      %s91 = sphi 0, %s89
      %s92 = sphi 0, %s91
      %s106 = sphi 0, %s92
      %s112 = sphi 0, %s114
      %s115 = sphi 0, %s112
      %s116 = sphi 0, %s115
      %s132 = sphi 0, %s116
    $region4: #{tpu_custom_call.1} parent=1 // loop_header_branch
      %16 = sbr.rel (%p14) target = $region8
    $region5: #{tpu_custom_call.1} parent=1 // loop_body
      %s18 = ssub.s32 %s13, 1
      %s19 = ssub.s32 %s13, 2
      %s20 = sadd.s32 %s13, 1
      %s21 = ssub.s32 %s13, %s20
      %p22 = scmp.eq.s32.totalorder %s21, 0
      %s24 = sadd.s32 %s23, 1
      %s25 = scalar_select %p22, %s23, %s24
      %p28 = pneg %p22
      %p29 = scmp.eq.s32.totalorder %s13, 1
      %p30 = por %p28, %p29
      %p31 = scmp.ne.s32.totalorder %s23, %s26
      %p32 = scmp.eq.s32.totalorder %s13, 0
      %p33 = por %p31, %p32
      %p34 = scmp.ne.s32.totalorder %s23, %s26
      %p35 = scmp.eq.s32.totalorder %s18, 1
      %p36 = por %p34, %p35
      %p37 = scmp.ne.s32.totalorder %s26, %s27
      %p38 = scmp.eq.s32.totalorder %s18, 0
      %p39 = por %p37, %p38
      %p40 = scmp.ne.s32.totalorder %s26, %s27
      %p41 = scmp.eq.s32.totalorder %s19, 1
      %p42 = por %p40, %p41
      %p44 = scmp.ne.s32.totalorder %s27, %s43
      %p45 = scmp.eq.s32.totalorder %s19, 0
      %p46 = por %p44, %p45
      %s48 = sadd.s32 %s47, 1
      %p51 = scmp.eq.s32.totalorder %s13, 1
      %p52 = scmp.ne.s32.totalorder %s47, %s49
      %p53 = scmp.eq.s32.totalorder %s13, 0
      %p54 = por %p52, %p53
      %p55 = scmp.ne.s32.totalorder %s47, %s49
      %p56 = scmp.eq.s32.totalorder %s18, 1
      %p57 = por %p55, %p56
      %p58 = scmp.ne.s32.totalorder %s49, %s50
      %p59 = scmp.eq.s32.totalorder %s18, 0
      %p60 = por %p58, %p59
      %p61 = scmp.ne.s32.totalorder %s49, %s50
      %p62 = scmp.eq.s32.totalorder %s19, 1
      %p63 = por %p61, %p62
      %p65 = scmp.ne.s32.totalorder %s50, %s64
      %p66 = scmp.eq.s32.totalorder %s19, 0
      %p67 = por %p65, %p66
      %s69 = sadd.s32 %s68, 1
      %p72 = scmp.eq.s32.totalorder %s13, 1
      %p73 = scmp.ne.s32.totalorder %s68, %s70
      %p74 = scmp.eq.s32.totalorder %s13, 0
      %p75 = por %p73, %p74
      %p76 = scmp.ne.s32.totalorder %s68, %s70
      %p77 = scmp.eq.s32.totalorder %s18, 1
      %p78 = por %p76, %p77
      %p79 = scmp.ne.s32.totalorder %s70, %s71
      %p80 = scmp.eq.s32.totalorder %s18, 0
      %p81 = por %p79, %p80
      %p82 = scmp.ne.s32.totalorder %s70, %s71
      %p83 = scmp.eq.s32.totalorder %s19, 1
      %p84 = por %p82, %p83
      %p86 = scmp.ne.s32.totalorder %s71, %s85
      %p87 = scmp.eq.s32.totalorder %s19, 0
      %p88 = por %p86, %p87
      %s90 = sadd.s32 %s89, 1
      %p93 = scmp.eq.s32.totalorder %s13, 1
      %p94 = scmp.ne.s32.totalorder %s89, %s91
      %p95 = scmp.eq.s32.totalorder %s13, 0
      %p96 = por %p94, %p95
      %p97 = scmp.ne.s32.totalorder %s89, %s91
      %p98 = scmp.eq.s32.totalorder %s18, 1
      %p99 = por %p97, %p98
      %p100 = scmp.ne.s32.totalorder %s91, %s92
      %p101 = scmp.eq.s32.totalorder %s18, 0
      %p102 = por %p100, %p101
      %p103 = scmp.ne.s32.totalorder %s91, %s92
      %p104 = scmp.eq.s32.totalorder %s19, 1
      %p105 = por %p103, %p104
      %p107 = scmp.ne.s32.totalorder %s92, %s106
      %p108 = scmp.eq.s32.totalorder %s19, 0
      %p109 = por %p107, %p108
      %s110 = ssub.s32 %s13, %s20
      %p111 = scmp.eq.s32.totalorder %s110, 0
      %s113 = sadd.s32 %s112, 1
      %s114 = scalar_select %p111, %s112, %s113
      %p117 = pneg %p111
      %p118 = scmp.eq.s32.totalorder %s13, 1
      %p119 = por %p117, %p118
      %p120 = scmp.ne.s32.totalorder %s112, %s115
      %p121 = scmp.eq.s32.totalorder %s13, 0
      %p122 = por %p120, %p121
      %p123 = scmp.ne.s32.totalorder %s112, %s115
      %p124 = scmp.eq.s32.totalorder %s18, 1
      %p125 = por %p123, %p124
      %p126 = scmp.ne.s32.totalorder %s115, %s116
      %p127 = scmp.eq.s32.totalorder %s18, 0
      %p128 = por %p126, %p127
      %p129 = scmp.ne.s32.totalorder %s115, %s116
      %p130 = scmp.eq.s32.totalorder %s19, 1
      %p131 = por %p129, %p130
      %p133 = scmp.ne.s32.totalorder %s116, %s132
      %p134 = scmp.eq.s32.totalorder %s19, 0
      %p135 = por %p133, %p134
      %p136 = scmp.le.s32.totalorder 1, %s13
      %p137 = scmp.lt.s32.totalorder %s13, 3
      %p138 = pnand %p136, %p137
      %p139 = pneg %p138
      // Predicated region
      $region9: #{tpu_custom_call.1} parent=5 // pred_check
        _
      $region10: #{tpu_custom_call.1} parent=5 // pred_check_branch
        %141 = sbr.rel (%p138) target = $region12
      $region11: #{tpu_custom_call.1} parent=5 // pred_region
        %s142 = ssub.s32 %s13, 1
        // Predicated region
        $region13: #{tpu_custom_call.1} parent=11 // pred_check
          %p143 = pneg %p60
        $region14: #{tpu_custom_call.1} parent=11 // pred_check_branch
          %145 = sbr.rel (%p143) target = $region16
        $region15: #{tpu_custom_call.1} parent=11 // pred_region
          _
        $region16: #{tpu_custom_call.1} parent=11 // pred_fallthru
          _
        // Predicated region
        $region17: #{tpu_custom_call.1} parent=11 // pred_check
          %p146 = pneg %p81
        $region18: #{tpu_custom_call.1} parent=11 // pred_check_branch
          %148 = sbr.rel (%p146) target = $region20
        $region19: #{tpu_custom_call.1} parent=11 // pred_region
          _
        $region20: #{tpu_custom_call.1} parent=11 // pred_fallthru
          _
        // Predicated region
        $region21: #{tpu_custom_call.1} parent=11 // pred_check
          %p149 = pneg %p102
        $region22: #{tpu_custom_call.1} parent=11 // pred_check_branch
          %151 = sbr.rel (%p149) target = $region24
        $region23: #{tpu_custom_call.1} parent=11 // pred_region
          _
        $region24: #{tpu_custom_call.1} parent=11 // pred_fallthru
          _
      $region12: #{tpu_custom_call.1} parent=5 // pred_fallthru
        _
      %p152 = scmp.lt.s32.totalorder %s13, 2
      // Predicated region
      $region25: #{tpu_custom_call.1} parent=5 // pred_check
        %p153 = pneg %p152
      $region26: #{tpu_custom_call.1} parent=5 // pred_check_branch
        %155 = sbr.rel (%p153) target = $region28
      $region27: #{tpu_custom_call.1} parent=5 // pred_region
        // Predicated region
        $region29: #{tpu_custom_call.1} parent=27 // pred_check
          %p156 = pneg %p33
        $region30: #{tpu_custom_call.1} parent=27 // pred_check_branch
          %158 = sbr.rel (%p156) target = $region32
        $region31: #{tpu_custom_call.1} parent=27 // pred_region
          %p159 = scmp.lt.s32.totalorder %s13, 1
          %s160 = scalar_select %p159, %s13, 1
          %s161 = smul.addr %s160, 4
          %s162 = smul.addr %s161, 8
          %s163 = scalar_lea.vmem %s0, %s162
        $region32: #{tpu_custom_call.1} parent=27 // pred_fallthru
          _
      $region28: #{tpu_custom_call.1} parent=5 // pred_fallthru
        _
      %p164 = scmp.le.s32.totalorder 1, %s13
      %p165 = scmp.lt.s32.totalorder %s13, 3
      %p166 = pnand %p164, %p165
      %p167 = pneg %p166
      // Predicated region
      $region33: #{tpu_custom_call.1} parent=5 // pred_check
        _
      $region34: #{tpu_custom_call.1} parent=5 // pred_check_branch
        %169 = sbr.rel (%p166) target = $region36
      $region35: #{tpu_custom_call.1} parent=5 // pred_region
        %s170 = ssub.s32 %s13, 1
        %p171 = scmp.lt.s32.totalorder %s18, 1
        %s172 = scalar_select %p171, %s18, 1
        %s173 = smul.addr %s172, 4
        %s174 = smul.addr %s173, 8
        %s175 = scalar_lea.vmem %s0, %s174
        %p176 = pneg %p39
        %p177 = pneg %p36
        %p178 = pneg %p60
        %p179 = pneg %p57
        %p180 = pneg %p81
        %p181 = pneg %p78
        %p182 = pneg %p102
        %p183 = pneg %p99
        %p184 = pneg %p128
        %p185 = pneg %p125
        %s186 = sand.u32 %s115, 1
        %s187 = scalar_lea.sflag [#allocation3], %s186
        %s188 = sand.u32 %s115, 1
        %s189 = smul.addr %s188, 24
        %s190 = scalar_lea.vmem [#allocation2], %s189
        %p191 = scmp.lt.s32.totalorder %s18, 1
        %s192 = scalar_select %p191, %s18, 1
        %s193 = smul.addr %s192, 4
        %s194 = smul.addr %s193, 8
        %s195 = scalar_lea.vmem %s0, %s194
        %v196 = vld [vmem:[%s2] sm:$0xff]
        %v197 = vld [vmem:[%s3] sm:$0xff]
        %v198 = vld [vmem:[%s195] sm:$0xff]
        %v199 = vld [vmem:[%s195 + $0x8] sm:$0xff]
        %v200 = vld [vmem:[%s195 + $0x10] sm:$0xff]
        %v201 = vld [vmem:[%s1] sm:$0xff]
        %v202 = vld [vmem:[%s195] sm:$0xff]
        %v203 = vld [vmem:[%s195 + $0x8] sm:$0xff]
        %v204 = vld [vmem:[%s195 + $0x10] sm:$0xff]
        %v205 = vld [vmem:[%s195 + $0x18] sm:$0xff]
        %s206 = scalar_lea.vmem %s1, 8
        %v207 = vld [vmem:[%s206] sm:$0xff]
        %212 = vrot.lane.b32.xlu0 %v202, 127
        %v213 = vpop.permute.xlu0 %212
        %214 = vrot.lane.b32.xlu0 %v203, 127
        %v215 = vpop.permute.xlu0 %214
        %216 = vrot.lane.b32.xlu0 %v204, 127
        %v217 = vpop.permute.xlu0 %216
        %218 = vrot.lane.b32.xlu0 %v205, 127
        %v219 = vpop.permute.xlu0 %218
        %vm220 = vcmask 1039360
        %v221 = vsel %vm220, %v213, %v215
        %v222 = vsel %vm220, %v215, %v217
        %v223 = vsel %vm220, %v217, %v219
        %vm227 = vcmask 64512
        %v229 = vsel %vm227, %v207, 0
        %231 = vmatprep.subr.mxu0 %v222
        %232 = vmatpush1.msra.mxu0 %v221
        %233 = vmatprep.subr.mxu0 0.0
        %234 = vmatpush1.msra.mxu0 0.0
        %235 = vmatprep.subr.mxu0 0.0
        %236 = vmatpush1.msra.mxu0 0.0
        %237 = vmatprep.subr.mxu0 0.0
        %238 = vmatpush1.msra.mxu0 0.0
        %239 = vmatprep.subr.mxu0 0.0
        %240 = vmatpush1.msra.mxu0 0.0
        %241 = vmatprep.subr.mxu0 0.0
        %242 = vmatpush1.msra.mxu0 0.0
        %243 = vmatprep.subr.mxu0 0.0
        %244 = vmatpush1.msra.mxu0 0.0
        %245 = vmatprep.subr.mxu0 0.0
        %246 = vmatpush1.msra.mxu0 0.0
        %247 = vmatprep.subr.mxu0 0.0
        %248 = vmatpush1.msra.mxu0 0.0
        %249 = vmatprep.subr.mxu0 0.0
        %250 = vmatpush1.msra.mxu0 0.0
        %251 = vmatprep.subr.mxu0 0.0
        %252 = vmatpush1.msra.mxu0 0.0
        %253 = vmatprep.subr.mxu0 0.0
        %254 = vmatpush1.msra.mxu0 0.0
        %255 = vmatprep.subr.mxu0 0.0
        %256 = vmatpush1.msra.mxu0 0.0
        %257 = vmatprep.subr.mxu0 0.0
        %258 = vmatpush1.msra.mxu0 0.0
        %259 = vmatprep.subr.mxu0 0.0
        %260 = vmatpush1.msra.mxu0 0.0
        %261 = vmatprep.subr.mxu0 0.0
        %262 = vmatpush1.msra.mxu0 0.0
        %263 = vmatprep.subr.mxu0 0.0
        %264 = vmatpush1.msra.mxu0 0.0
        %265 = vmatprep.subr.mxu0 0.0
        %266 = vmatpush1.msra.mxu0 0.0
        %267 = vmatprep.subr.mxu0 0.0
        %268 = vmatpush1.msra.mxu0 0.0
        %269 = vmatprep.subr.mxu0 0.0
        %270 = vmatpush1.msra.mxu0 0.0
        %271 = vmatprep.subr.mxu0 0.0
        %272 = vmatpush1.msra.mxu0 0.0
        %273 = vmatprep.subr.mxu0 0.0
        %274 = vmatpush1.msra.mxu0 0.0
        %275 = vmatprep.subr.mxu0 0.0
        %276 = vmatpush1.msra.mxu0 0.0
        %277 = vmatprep.subr.mxu0 0.0
        %278 = vmatpush1.msra.mxu0 0.0
        %279 = vmatprep.subr.mxu0 0.0
        %280 = vmatpush1.msra.mxu0 0.0
        %281 = vmatprep.subr.mxu0 0.0
        %282 = vmatpush1.msra.mxu0 0.0
        %283 = vmatprep.subr.mxu0 0.0
        %284 = vmatpush1.msra.mxu0 0.0
        %285 = vmatprep.subr.mxu0 0.0
        %286 = vmatpush1.msra.mxu0 0.0
        %287 = vmatprep.subr.mxu0 0.0
        %288 = vmatpush1.msra.mxu0 0.0
        %289 = vmatprep.subr.mxu0 0.0
        %290 = vmatpush1.msra.mxu0 0.0
        %291 = vmatprep.subr.mxu0 0.0
        %292 = vmatpush1.msra.mxu0 0.0
        %293 = vmatprep.subr.mxu0 0.0
        %294 = vmatpush1.msra.mxu0 0.0
        %295 = vmatprep.mubr.f32.mxu0 0.0
        %296 = vmatmul.mubr.f32.gmra.mrb[0].mxu0 %v229
        %v297 = vpop.f32.mrb[0].mxu0
        %v298 = vadd.f32 0.0, %v297
        %v299 = vpop.f32.mrb[0].mxu0
        %v300 = vadd.f32 0.0, %v299
        %301 = vdwg.mxu0
        %302 = vmatprep.subr.mxu0 0.0
        %303 = vmatpush1.msra.mxu0 %v223
        %304 = vmatprep.subr.mxu0 0.0
        %305 = vmatpush1.msra.mxu0 0.0
        %306 = vmatprep.subr.mxu0 0.0
        %307 = vmatpush1.msra.mxu0 0.0
        %308 = vmatprep.subr.mxu0 0.0
        %309 = vmatpush1.msra.mxu0 0.0
        %310 = vmatprep.subr.mxu0 0.0
        %311 = vmatpush1.msra.mxu0 0.0
        %312 = vmatprep.subr.mxu0 0.0
        %313 = vmatpush1.msra.mxu0 0.0
        %314 = vmatprep.subr.mxu0 0.0
        %315 = vmatpush1.msra.mxu0 0.0
        %316 = vmatprep.subr.mxu0 0.0
        %317 = vmatpush1.msra.mxu0 0.0
        %318 = vmatprep.subr.mxu0 0.0
        %319 = vmatpush1.msra.mxu0 0.0
        %320 = vmatprep.subr.mxu0 0.0
        %321 = vmatpush1.msra.mxu0 0.0
        %322 = vmatprep.subr.mxu0 0.0
        %323 = vmatpush1.msra.mxu0 0.0
        %324 = vmatprep.subr.mxu0 0.0
        %325 = vmatpush1.msra.mxu0 0.0
        %326 = vmatprep.subr.mxu0 0.0
        %327 = vmatpush1.msra.mxu0 0.0
        %328 = vmatprep.subr.mxu0 0.0
        %329 = vmatpush1.msra.mxu0 0.0
        %330 = vmatprep.subr.mxu0 0.0
        %331 = vmatpush1.msra.mxu0 0.0
        %332 = vmatprep.subr.mxu0 0.0
        %333 = vmatpush1.msra.mxu0 0.0
        %334 = vmatprep.subr.mxu0 0.0
        %335 = vmatpush1.msra.mxu0 0.0
        %336 = vmatprep.subr.mxu0 0.0
        %337 = vmatpush1.msra.mxu0 0.0
        %338 = vmatprep.subr.mxu0 0.0
        %339 = vmatpush1.msra.mxu0 0.0
        %340 = vmatprep.subr.mxu0 0.0
        %341 = vmatpush1.msra.mxu0 0.0
        %342 = vmatprep.subr.mxu0 0.0
        %343 = vmatpush1.msra.mxu0 0.0
        %344 = vmatprep.subr.mxu0 0.0
        %345 = vmatpush1.msra.mxu0 0.0
        %346 = vmatprep.subr.mxu0 0.0
        %347 = vmatpush1.msra.mxu0 0.0
        %348 = vmatprep.subr.mxu0 0.0
        %349 = vmatpush1.msra.mxu0 0.0
        %350 = vmatprep.subr.mxu0 0.0
        %351 = vmatpush1.msra.mxu0 0.0
        %352 = vmatprep.subr.mxu0 0.0
        %353 = vmatpush1.msra.mxu0 0.0
        %354 = vmatprep.subr.mxu0 0.0
        %355 = vmatpush1.msra.mxu0 0.0
        %356 = vmatprep.subr.mxu0 0.0
        %357 = vmatpush1.msra.mxu0 0.0
        %358 = vmatprep.subr.mxu0 0.0
        %359 = vmatpush1.msra.mxu0 0.0
        %360 = vmatprep.subr.mxu0 0.0
        %361 = vmatpush1.msra.mxu0 0.0
        %362 = vmatprep.subr.mxu0 0.0
        %363 = vmatpush1.msra.mxu0 0.0
        %364 = vmatprep.subr.mxu0 0.0
        %365 = vmatpush1.msra.mxu0 0.0
        %366 = vmatprep.mubr.f32.mxu0 0.0
        %367 = vmatmul.mubr.f32.gmra.mrb[0].mxu0 %v229
        %v368 = vpop.f32.mrb[0].mxu0
        %v369 = vadd.f32 0.0, %v368
        %v370 = vpop.f32.mrb[0].mxu0
        %371 = vdwg.mxu0
        %v373 = vsel %vm227, %v201, 0
        %375 = vmatprep.subr.mxu0 %v199
        %376 = vmatpush1.msra.mxu0 %v198
        %377 = vmatprep.subr.mxu0 0.0
        %378 = vmatpush1.msra.mxu0 0.0
        %379 = vmatprep.subr.mxu0 0.0
        %380 = vmatpush1.msra.mxu0 0.0
        %381 = vmatprep.subr.mxu0 0.0
        %382 = vmatpush1.msra.mxu0 0.0
        %383 = vmatprep.subr.mxu0 0.0
        %384 = vmatpush1.msra.mxu0 0.0
        %385 = vmatprep.subr.mxu0 0.0
        %386 = vmatpush1.msra.mxu0 0.0
        %387 = vmatprep.subr.mxu0 0.0
        %388 = vmatpush1.msra.mxu0 0.0
        %389 = vmatprep.subr.mxu0 0.0
        %390 = vmatpush1.msra.mxu0 0.0
        %391 = vmatprep.subr.mxu0 0.0
        %392 = vmatpush1.msra.mxu0 0.0
        %393 = vmatprep.subr.mxu0 0.0
        %394 = vmatpush1.msra.mxu0 0.0
        %395 = vmatprep.subr.mxu0 0.0
        %396 = vmatpush1.msra.mxu0 0.0
        %397 = vmatprep.subr.mxu0 0.0
        %398 = vmatpush1.msra.mxu0 0.0
        %399 = vmatprep.subr.mxu0 0.0
        %400 = vmatpush1.msra.mxu0 0.0
        %401 = vmatprep.subr.mxu0 0.0
        %402 = vmatpush1.msra.mxu0 0.0
        %403 = vmatprep.subr.mxu0 0.0
        %404 = vmatpush1.msra.mxu0 0.0
        %405 = vmatprep.subr.mxu0 0.0
        %406 = vmatpush1.msra.mxu0 0.0
        %407 = vmatprep.subr.mxu0 0.0
        %408 = vmatpush1.msra.mxu0 0.0
        %409 = vmatprep.subr.mxu0 0.0
        %410 = vmatpush1.msra.mxu0 0.0
        %411 = vmatprep.subr.mxu0 0.0
        %412 = vmatpush1.msra.mxu0 0.0
        %413 = vmatprep.subr.mxu0 0.0
        %414 = vmatpush1.msra.mxu0 0.0
        %415 = vmatprep.subr.mxu0 0.0
        %416 = vmatpush1.msra.mxu0 0.0
        %417 = vmatprep.subr.mxu0 0.0
        %418 = vmatpush1.msra.mxu0 0.0
        %419 = vmatprep.subr.mxu0 0.0
        %420 = vmatpush1.msra.mxu0 0.0
        %421 = vmatprep.subr.mxu0 0.0
        %422 = vmatpush1.msra.mxu0 0.0
        %423 = vmatprep.subr.mxu0 0.0
        %424 = vmatpush1.msra.mxu0 0.0
        %425 = vmatprep.subr.mxu0 0.0
        %426 = vmatpush1.msra.mxu0 0.0
        %427 = vmatprep.subr.mxu0 0.0
        %428 = vmatpush1.msra.mxu0 0.0
        %429 = vmatprep.subr.mxu0 0.0
        %430 = vmatpush1.msra.mxu0 0.0
        %431 = vmatprep.subr.mxu0 0.0
        %432 = vmatpush1.msra.mxu0 0.0
        %433 = vmatprep.subr.mxu0 0.0
        %434 = vmatpush1.msra.mxu0 0.0
        %435 = vmatprep.subr.mxu0 0.0
        %436 = vmatpush1.msra.mxu0 0.0
        %437 = vmatprep.subr.mxu0 0.0
        %438 = vmatpush1.msra.mxu0 0.0
        %439 = vmatprep.mubr.f32.mxu0 0.0
        %440 = vmatmul.mubr.f32.gmra.mrb[0].mxu0 %v373
        %v441 = vpop.f32.mrb[0].mxu0
        %v442 = vadd.f32 %v298, %v441
        %v443 = vpop.f32.mrb[0].mxu0
        %v444 = vadd.f32 %v300, %v443
        %445 = vdwg.mxu0
        %446 = vmatprep.subr.mxu0 0.0
        %447 = vmatpush1.msra.mxu0 %v200
        %448 = vmatprep.subr.mxu0 0.0
        %449 = vmatpush1.msra.mxu0 0.0
        %450 = vmatprep.subr.mxu0 0.0
        %451 = vmatpush1.msra.mxu0 0.0
        %452 = vmatprep.subr.mxu0 0.0
        %453 = vmatpush1.msra.mxu0 0.0
        %454 = vmatprep.subr.mxu0 0.0
        %455 = vmatpush1.msra.mxu0 0.0
        %456 = vmatprep.subr.mxu0 0.0
        %457 = vmatpush1.msra.mxu0 0.0
        %458 = vmatprep.subr.mxu0 0.0
        %459 = vmatpush1.msra.mxu0 0.0
        %460 = vmatprep.subr.mxu0 0.0
        %461 = vmatpush1.msra.mxu0 0.0
        %462 = vmatprep.subr.mxu0 0.0
        %463 = vmatpush1.msra.mxu0 0.0
        %464 = vmatprep.subr.mxu0 0.0
        %465 = vmatpush1.msra.mxu0 0.0
        %466 = vmatprep.subr.mxu0 0.0
        %467 = vmatpush1.msra.mxu0 0.0
        %468 = vmatprep.subr.mxu0 0.0
        %469 = vmatpush1.msra.mxu0 0.0
        %470 = vmatprep.subr.mxu0 0.0
        %471 = vmatpush1.msra.mxu0 0.0
        %472 = vmatprep.subr.mxu0 0.0
        %473 = vmatpush1.msra.mxu0 0.0
        %474 = vmatprep.subr.mxu0 0.0
        %475 = vmatpush1.msra.mxu0 0.0
        %476 = vmatprep.subr.mxu0 0.0
        %477 = vmatpush1.msra.mxu0 0.0
        %478 = vmatprep.subr.mxu0 0.0
        %479 = vmatpush1.msra.mxu0 0.0
        %480 = vmatprep.subr.mxu0 0.0
        %481 = vmatpush1.msra.mxu0 0.0
        %482 = vmatprep.subr.mxu0 0.0
        %483 = vmatpush1.msra.mxu0 0.0
        %484 = vmatprep.subr.mxu0 0.0
        %485 = vmatpush1.msra.mxu0 0.0
        %486 = vmatprep.subr.mxu0 0.0
        %487 = vmatpush1.msra.mxu0 0.0
        %488 = vmatprep.subr.mxu0 0.0
        %489 = vmatpush1.msra.mxu0 0.0
        %490 = vmatprep.subr.mxu0 0.0
        %491 = vmatpush1.msra.mxu0 0.0
        %492 = vmatprep.subr.mxu0 0.0
        %493 = vmatpush1.msra.mxu0 0.0
        %494 = vmatprep.subr.mxu0 0.0
        %495 = vmatpush1.msra.mxu0 0.0
        %496 = vmatprep.subr.mxu0 0.0
        %497 = vmatpush1.msra.mxu0 0.0
        %498 = vmatprep.subr.mxu0 0.0
        %499 = vmatpush1.msra.mxu0 0.0
        %500 = vmatprep.subr.mxu0 0.0
        %501 = vmatpush1.msra.mxu0 0.0
        %502 = vmatprep.subr.mxu0 0.0
        %503 = vmatpush1.msra.mxu0 0.0
        %504 = vmatprep.subr.mxu0 0.0
        %505 = vmatpush1.msra.mxu0 0.0
        %506 = vmatprep.subr.mxu0 0.0
        %507 = vmatpush1.msra.mxu0 0.0
        %508 = vmatprep.subr.mxu0 0.0
        %509 = vmatpush1.msra.mxu0 0.0
        %510 = vmatprep.mubr.f32.mxu0 0.0
        %511 = vmatmul.mubr.f32.gmra.mrb[0].mxu0 %v373
        %v512 = vpop.f32.mrb[0].mxu0
        %v513 = vadd.f32 %v369, %v512
        %v514 = vpop.f32.mrb[0].mxu0
        %515 = vdwg.mxu0
        %s516 = scalar_lea.vmem %s1, 16
        %v517 = vld [vmem:[%s516] sm:$0xff]
        %518 = vrot.lane.b32.xlu0 %v202, 126
        %v519 = vpop.permute.xlu0 %518
        %520 = vrot.lane.b32.xlu0 %v203, 126
        %v521 = vpop.permute.xlu0 %520
        %522 = vrot.lane.b32.xlu0 %v204, 126
        %v523 = vpop.permute.xlu0 %522
        %524 = vrot.lane.b32.xlu0 %v205, 126
        %v525 = vpop.permute.xlu0 %524
        %vm526 = vcmask 1031168
        %v527 = vsel %vm526, %v519, %v521
        %v528 = vsel %vm526, %v521, %v523
        %v529 = vsel %vm526, %v523, %v525
        %v534 = vsel %vm227, %v517, 0
        %536 = vmatprep.subr.mxu0 %v528
        %537 = vmatpush1.msra.mxu0 %v527
        %538 = vmatprep.subr.mxu0 0.0
        %539 = vmatpush1.msra.mxu0 0.0
        %540 = vmatprep.subr.mxu0 0.0
        %541 = vmatpush1.msra.mxu0 0.0
        %542 = vmatprep.subr.mxu0 0.0
        %543 = vmatpush1.msra.mxu0 0.0
        %544 = vmatprep.subr.mxu0 0.0
        %545 = vmatpush1.msra.mxu0 0.0
        %546 = vmatprep.subr.mxu0 0.0
        %547 = vmatpush1.msra.mxu0 0.0
        %548 = vmatprep.subr.mxu0 0.0
        %549 = vmatpush1.msra.mxu0 0.0
        %550 = vmatprep.subr.mxu0 0.0
        %551 = vmatpush1.msra.mxu0 0.0
        %552 = vmatprep.subr.mxu0 0.0
        %553 = vmatpush1.msra.mxu0 0.0
        %554 = vmatprep.subr.mxu0 0.0
        %555 = vmatpush1.msra.mxu0 0.0
        %556 = vmatprep.subr.mxu0 0.0
        %557 = vmatpush1.msra.mxu0 0.0
        %558 = vmatprep.subr.mxu0 0.0
        %559 = vmatpush1.msra.mxu0 0.0
        %560 = vmatprep.subr.mxu0 0.0
        %561 = vmatpush1.msra.mxu0 0.0
        %562 = vmatprep.subr.mxu0 0.0
        %563 = vmatpush1.msra.mxu0 0.0
        %564 = vmatprep.subr.mxu0 0.0
        %565 = vmatpush1.msra.mxu0 0.0
        %566 = vmatprep.subr.mxu0 0.0
        %567 = vmatpush1.msra.mxu0 0.0
        %568 = vmatprep.subr.mxu0 0.0
        %569 = vmatpush1.msra.mxu0 0.0
        %570 = vmatprep.subr.mxu0 0.0
        %571 = vmatpush1.msra.mxu0 0.0
        %572 = vmatprep.subr.mxu0 0.0
        %573 = vmatpush1.msra.mxu0 0.0
        %574 = vmatprep.subr.mxu0 0.0
        %575 = vmatpush1.msra.mxu0 0.0
        %576 = vmatprep.subr.mxu0 0.0
        %577 = vmatpush1.msra.mxu0 0.0
        %578 = vmatprep.subr.mxu0 0.0
        %579 = vmatpush1.msra.mxu0 0.0
        %580 = vmatprep.subr.mxu0 0.0
        %581 = vmatpush1.msra.mxu0 0.0
        %582 = vmatprep.subr.mxu0 0.0
        %583 = vmatpush1.msra.mxu0 0.0
        %584 = vmatprep.subr.mxu0 0.0
        %585 = vmatpush1.msra.mxu0 0.0
        %586 = vmatprep.subr.mxu0 0.0
        %587 = vmatpush1.msra.mxu0 0.0
        %588 = vmatprep.subr.mxu0 0.0
        %589 = vmatpush1.msra.mxu0 0.0
        %590 = vmatprep.subr.mxu0 0.0
        %591 = vmatpush1.msra.mxu0 0.0
        %592 = vmatprep.subr.mxu0 0.0
        %593 = vmatpush1.msra.mxu0 0.0
        %594 = vmatprep.subr.mxu0 0.0
        %595 = vmatpush1.msra.mxu0 0.0
        %596 = vmatprep.subr.mxu0 0.0
        %597 = vmatpush1.msra.mxu0 0.0
        %598 = vmatprep.subr.mxu0 0.0
        %599 = vmatpush1.msra.mxu0 0.0
        %600 = vmatprep.mubr.f32.mxu0 0.0
        %601 = vmatmul.mubr.f32.gmra.mrb[0].mxu0 %v534
        %v602 = vpop.f32.mrb[0].mxu0
        %v603 = vadd.f32 0.0, %v602
        %v604 = vpop.f32.mrb[0].mxu0
        %v605 = vadd.f32 0.0, %v604
        %606 = vdwg.mxu0
        %607 = vmatprep.subr.mxu0 0.0
        %608 = vmatpush1.msra.mxu0 %v529
        %609 = vmatprep.subr.mxu0 0.0
        %610 = vmatpush1.msra.mxu0 0.0
        %611 = vmatprep.subr.mxu0 0.0
        %612 = vmatpush1.msra.mxu0 0.0
        %613 = vmatprep.subr.mxu0 0.0
        %614 = vmatpush1.msra.mxu0 0.0
        %615 = vmatprep.subr.mxu0 0.0
        %616 = vmatpush1.msra.mxu0 0.0
        %617 = vmatprep.subr.mxu0 0.0
        %618 = vmatpush1.msra.mxu0 0.0
        %619 = vmatprep.subr.mxu0 0.0
        %620 = vmatpush1.msra.mxu0 0.0
        %621 = vmatprep.subr.mxu0 0.0
        %622 = vmatpush1.msra.mxu0 0.0
        %623 = vmatprep.subr.mxu0 0.0
        %624 = vmatpush1.msra.mxu0 0.0
        %625 = vmatprep.subr.mxu0 0.0
        %626 = vmatpush1.msra.mxu0 0.0
        %627 = vmatprep.subr.mxu0 0.0
        %628 = vmatpush1.msra.mxu0 0.0
        %629 = vmatprep.subr.mxu0 0.0
        %630 = vmatpush1.msra.mxu0 0.0
        %631 = vmatprep.subr.mxu0 0.0
        %632 = vmatpush1.msra.mxu0 0.0
        %633 = vmatprep.subr.mxu0 0.0
        %634 = vmatpush1.msra.mxu0 0.0
        %635 = vmatprep.subr.mxu0 0.0
        %636 = vmatpush1.msra.mxu0 0.0
        %637 = vmatprep.subr.mxu0 0.0
        %638 = vmatpush1.msra.mxu0 0.0
        %639 = vmatprep.subr.mxu0 0.0
        %640 = vmatpush1.msra.mxu0 0.0
        %641 = vmatprep.subr.mxu0 0.0
        %642 = vmatpush1.msra.mxu0 0.0
        %643 = vmatprep.subr.mxu0 0.0
        %644 = vmatpush1.msra.mxu0 0.0
        %645 = vmatprep.subr.mxu0 0.0
        %646 = vmatpush1.msra.mxu0 0.0
        %647 = vmatprep.subr.mxu0 0.0
        %648 = vmatpush1.msra.mxu0 0.0
        %649 = vmatprep.subr.mxu0 0.0
        %650 = vmatpush1.msra.mxu0 0.0
        %651 = vmatprep.subr.mxu0 0.0
        %652 = vmatpush1.msra.mxu0 0.0
        %653 = vmatprep.subr.mxu0 0.0
        %654 = vmatpush1.msra.mxu0 0.0
        %655 = vmatprep.subr.mxu0 0.0
        %656 = vmatpush1.msra.mxu0 0.0
        %657 = vmatprep.subr.mxu0 0.0
        %658 = vmatpush1.msra.mxu0 0.0
        %659 = vmatprep.subr.mxu0 0.0
        %660 = vmatpush1.msra.mxu0 0.0
        %661 = vmatprep.subr.mxu0 0.0
        %662 = vmatpush1.msra.mxu0 0.0
        %663 = vmatprep.subr.mxu0 0.0
        %664 = vmatpush1.msra.mxu0 0.0
        %665 = vmatprep.subr.mxu0 0.0
        %666 = vmatpush1.msra.mxu0 0.0
        %667 = vmatprep.subr.mxu0 0.0
        %668 = vmatpush1.msra.mxu0 0.0
        %669 = vmatprep.subr.mxu0 0.0
        %670 = vmatpush1.msra.mxu0 0.0
        %671 = vmatprep.mubr.f32.mxu0 0.0
        %672 = vmatmul.mubr.f32.gmra.mrb[0].mxu0 %v534
        %v673 = vpop.f32.mrb[0].mxu0
        %v674 = vadd.f32 0.0, %v673
        %v675 = vpop.f32.mrb[0].mxu0
        %676 = vdwg.mxu0
        %v677 = vadd.f32 %v442, %v603
        %v678 = vadd.f32 %v444, %v605
        %v679 = vadd.f32 %v513, %v674
        %s680 = scalar_lea.vmem %s1, 24
        %v681 = vld [vmem:[%s680] sm:$0xff]
        %682 = vrot.lane.b32.xlu0 %v202, 110
        %v683 = vpop.permute.xlu0 %682
        %684 = vrot.lane.b32.xlu0 %v203, 110
        %v685 = vpop.permute.xlu0 %684
        %686 = vrot.lane.b32.xlu0 %v204, 110
        %v687 = vpop.permute.xlu0 %686
        %688 = vrot.lane.b32.xlu0 %v205, 110
        %v689 = vpop.permute.xlu0 %688
        %vm690 = vcmask 900096
        %v691 = vsel %vm690, %v683, %v685
        %v692 = vsel %vm690, %v685, %v687
        %v693 = vsel %vm690, %v687, %v689
        %v698 = vsel %vm227, %v681, 0
        %700 = vmatprep.subr.mxu0 %v692
        %701 = vmatpush1.msra.mxu0 %v691
        %702 = vmatprep.subr.mxu0 0.0
        %703 = vmatpush1.msra.mxu0 0.0
        %704 = vmatprep.subr.mxu0 0.0
        %705 = vmatpush1.msra.mxu0 0.0
        %706 = vmatprep.subr.mxu0 0.0
        %707 = vmatpush1.msra.mxu0 0.0
        %708 = vmatprep.subr.mxu0 0.0
        %709 = vmatpush1.msra.mxu0 0.0
        %710 = vmatprep.subr.mxu0 0.0
        %711 = vmatpush1.msra.mxu0 0.0
        %712 = vmatprep.subr.mxu0 0.0
        %713 = vmatpush1.msra.mxu0 0.0
        %714 = vmatprep.subr.mxu0 0.0
        %715 = vmatpush1.msra.mxu0 0.0
        %716 = vmatprep.subr.mxu0 0.0
        %717 = vmatpush1.msra.mxu0 0.0
        %718 = vmatprep.subr.mxu0 0.0
        %719 = vmatpush1.msra.mxu0 0.0
        %720 = vmatprep.subr.mxu0 0.0
        %721 = vmatpush1.msra.mxu0 0.0
        %722 = vmatprep.subr.mxu0 0.0
        %723 = vmatpush1.msra.mxu0 0.0
        %724 = vmatprep.subr.mxu0 0.0
        %725 = vmatpush1.msra.mxu0 0.0
        %726 = vmatprep.subr.mxu0 0.0
        %727 = vmatpush1.msra.mxu0 0.0
        %728 = vmatprep.subr.mxu0 0.0
        %729 = vmatpush1.msra.mxu0 0.0
        %730 = vmatprep.subr.mxu0 0.0
        %731 = vmatpush1.msra.mxu0 0.0
        %732 = vmatprep.subr.mxu0 0.0
        %733 = vmatpush1.msra.mxu0 0.0
        %734 = vmatprep.subr.mxu0 0.0
        %735 = vmatpush1.msra.mxu0 0.0
        %736 = vmatprep.subr.mxu0 0.0
        %737 = vmatpush1.msra.mxu0 0.0
        %738 = vmatprep.subr.mxu0 0.0
        %739 = vmatpush1.msra.mxu0 0.0
        %740 = vmatprep.subr.mxu0 0.0
        %741 = vmatpush1.msra.mxu0 0.0
        %742 = vmatprep.subr.mxu0 0.0
        %743 = vmatpush1.msra.mxu0 0.0
        %744 = vmatprep.subr.mxu0 0.0
        %745 = vmatpush1.msra.mxu0 0.0
        %746 = vmatprep.subr.mxu0 0.0
        %747 = vmatpush1.msra.mxu0 0.0
        %748 = vmatprep.subr.mxu0 0.0
        %749 = vmatpush1.msra.mxu0 0.0
        %750 = vmatprep.subr.mxu0 0.0
        %751 = vmatpush1.msra.mxu0 0.0
        %752 = vmatprep.subr.mxu0 0.0
        %753 = vmatpush1.msra.mxu0 0.0
        %754 = vmatprep.subr.mxu0 0.0
        %755 = vmatpush1.msra.mxu0 0.0
        %756 = vmatprep.subr.mxu0 0.0
        %757 = vmatpush1.msra.mxu0 0.0
        %758 = vmatprep.subr.mxu0 0.0
        %759 = vmatpush1.msra.mxu0 0.0
        %760 = vmatprep.subr.mxu0 0.0
        %761 = vmatpush1.msra.mxu0 0.0
        %762 = vmatprep.subr.mxu0 0.0
        %763 = vmatpush1.msra.mxu0 0.0
        %764 = vmatprep.mubr.f32.mxu0 0.0
        %765 = vmatmul.mubr.f32.gmra.mrb[0].mxu0 %v698
        %v766 = vpop.f32.mrb[0].mxu0
        %v767 = vadd.f32 0.0, %v766
        %v768 = vpop.f32.mrb[0].mxu0
        %v769 = vadd.f32 0.0, %v768
        %770 = vdwg.mxu0
        %771 = vmatprep.subr.mxu0 0.0
        %772 = vmatpush1.msra.mxu0 %v693
        %773 = vmatprep.subr.mxu0 0.0
        %774 = vmatpush1.msra.mxu0 0.0
        %775 = vmatprep.subr.mxu0 0.0
        %776 = vmatpush1.msra.mxu0 0.0
        %777 = vmatprep.subr.mxu0 0.0
        %778 = vmatpush1.msra.mxu0 0.0
        %779 = vmatprep.subr.mxu0 0.0
        %780 = vmatpush1.msra.mxu0 0.0
        %781 = vmatprep.subr.mxu0 0.0
        %782 = vmatpush1.msra.mxu0 0.0
        %783 = vmatprep.subr.mxu0 0.0
        %784 = vmatpush1.msra.mxu0 0.0
        %785 = vmatprep.subr.mxu0 0.0
        %786 = vmatpush1.msra.mxu0 0.0
        %787 = vmatprep.subr.mxu0 0.0
        %788 = vmatpush1.msra.mxu0 0.0
        %789 = vmatprep.subr.mxu0 0.0
        %790 = vmatpush1.msra.mxu0 0.0
        %791 = vmatprep.subr.mxu0 0.0
        %792 = vmatpush1.msra.mxu0 0.0
        %793 = vmatprep.subr.mxu0 0.0
        %794 = vmatpush1.msra.mxu0 0.0
        %795 = vmatprep.subr.mxu0 0.0
        %796 = vmatpush1.msra.mxu0 0.0
        %797 = vmatprep.subr.mxu0 0.0
        %798 = vmatpush1.msra.mxu0 0.0
        %799 = vmatprep.subr.mxu0 0.0
        %800 = vmatpush1.msra.mxu0 0.0
        %801 = vmatprep.subr.mxu0 0.0
        %802 = vmatpush1.msra.mxu0 0.0
        %803 = vmatprep.subr.mxu0 0.0
        %804 = vmatpush1.msra.mxu0 0.0
        %805 = vmatprep.subr.mxu0 0.0
        %806 = vmatpush1.msra.mxu0 0.0
        %807 = vmatprep.subr.mxu0 0.0
        %808 = vmatpush1.msra.mxu0 0.0
        %809 = vmatprep.subr.mxu0 0.0
        %810 = vmatpush1.msra.mxu0 0.0
        %811 = vmatprep.subr.mxu0 0.0
        %812 = vmatpush1.msra.mxu0 0.0
        %813 = vmatprep.subr.mxu0 0.0
        %814 = vmatpush1.msra.mxu0 0.0
        %815 = vmatprep.subr.mxu0 0.0
        %816 = vmatpush1.msra.mxu0 0.0
        %817 = vmatprep.subr.mxu0 0.0
        %818 = vmatpush1.msra.mxu0 0.0
        %819 = vmatprep.subr.mxu0 0.0
        %820 = vmatpush1.msra.mxu0 0.0
        %821 = vmatprep.subr.mxu0 0.0
        %822 = vmatpush1.msra.mxu0 0.0
        %823 = vmatprep.subr.mxu0 0.0
        %824 = vmatpush1.msra.mxu0 0.0
        %825 = vmatprep.subr.mxu0 0.0
        %826 = vmatpush1.msra.mxu0 0.0
        %827 = vmatprep.subr.mxu0 0.0
        %828 = vmatpush1.msra.mxu0 0.0
        %829 = vmatprep.subr.mxu0 0.0
        %830 = vmatpush1.msra.mxu0 0.0
        %831 = vmatprep.subr.mxu0 0.0
        %832 = vmatpush1.msra.mxu0 0.0
        %833 = vmatprep.subr.mxu0 0.0
        %834 = vmatpush1.msra.mxu0 0.0
        %835 = vmatprep.mubr.f32.mxu0 0.0
        %836 = vmatmul.mubr.f32.gmra.mrb[0].mxu0 %v698
        %v837 = vpop.f32.mrb[0].mxu0
        %v838 = vadd.f32 0.0, %v837
        %v839 = vpop.f32.mrb[0].mxu0
        %840 = vdwg.mxu0
        %v841 = vadd.f32 %v677, %v767
        %v842 = vadd.f32 %v678, %v769
        %v843 = vadd.f32 %v679, %v838
        %s844 = scalar_lea.vmem %s1, 32
        %v845 = vld [vmem:[%s844] sm:$0xff]
        %846 = vrot.lane.b32.xlu0 %v202, 109
        %v847 = vpop.permute.xlu0 %846
        %848 = vrot.lane.b32.xlu0 %v203, 109
        %v849 = vpop.permute.xlu0 %848
        %850 = vrot.lane.b32.xlu0 %v204, 109
        %v851 = vpop.permute.xlu0 %850
        %852 = vrot.lane.b32.xlu0 %v205, 109
        %v853 = vpop.permute.xlu0 %852
        %vm854 = vcmask 891904
        %v855 = vsel %vm854, %v847, %v849
        %v856 = vsel %vm854, %v849, %v851
        %v857 = vsel %vm854, %v851, %v853
        %v862 = vsel %vm227, %v845, 0
        %864 = vmatprep.subr.mxu0 %v856
        %865 = vmatpush1.msra.mxu0 %v855
        %866 = vmatprep.subr.mxu0 0.0
        %867 = vmatpush1.msra.mxu0 0.0
        %868 = vmatprep.subr.mxu0 0.0
        %869 = vmatpush1.msra.mxu0 0.0
        %870 = vmatprep.subr.mxu0 0.0
        %871 = vmatpush1.msra.mxu0 0.0
        %872 = vmatprep.subr.mxu0 0.0
        %873 = vmatpush1.msra.mxu0 0.0
        %874 = vmatprep.subr.mxu0 0.0
        %875 = vmatpush1.msra.mxu0 0.0
        %876 = vmatprep.subr.mxu0 0.0
        %877 = vmatpush1.msra.mxu0 0.0
        %878 = vmatprep.subr.mxu0 0.0
        %879 = vmatpush1.msra.mxu0 0.0
        %880 = vmatprep.subr.mxu0 0.0
        %881 = vmatpush1.msra.mxu0 0.0
        %882 = vmatprep.subr.mxu0 0.0
        %883 = vmatpush1.msra.mxu0 0.0
        %884 = vmatprep.subr.mxu0 0.0
        %885 = vmatpush1.msra.mxu0 0.0
        %886 = vmatprep.subr.mxu0 0.0
        %887 = vmatpush1.msra.mxu0 0.0
        %888 = vmatprep.subr.mxu0 0.0
        %889 = vmatpush1.msra.mxu0 0.0
        %890 = vmatprep.subr.mxu0 0.0
        %891 = vmatpush1.msra.mxu0 0.0
        %892 = vmatprep.subr.mxu0 0.0
        %893 = vmatpush1.msra.mxu0 0.0
        %894 = vmatprep.subr.mxu0 0.0
        %895 = vmatpush1.msra.mxu0 0.0
        %896 = vmatprep.subr.mxu0 0.0
        %897 = vmatpush1.msra.mxu0 0.0
        %898 = vmatprep.subr.mxu0 0.0
        %899 = vmatpush1.msra.mxu0 0.0
        %900 = vmatprep.subr.mxu0 0.0
        %901 = vmatpush1.msra.mxu0 0.0
        %902 = vmatprep.subr.mxu0 0.0
        %903 = vmatpush1.msra.mxu0 0.0
        %904 = vmatprep.subr.mxu0 0.0
        %905 = vmatpush1.msra.mxu0 0.0
        %906 = vmatprep.subr.mxu0 0.0
        %907 = vmatpush1.msra.mxu0 0.0
        %908 = vmatprep.subr.mxu0 0.0
        %909 = vmatpush1.msra.mxu0 0.0
        %910 = vmatprep.subr.mxu0 0.0
        %911 = vmatpush1.msra.mxu0 0.0
        %912 = vmatprep.subr.mxu0 0.0
        %913 = vmatpush1.msra.mxu0 0.0
        %914 = vmatprep.subr.mxu0 0.0
        %915 = vmatpush1.msra.mxu0 0.0
        %916 = vmatprep.subr.mxu0 0.0
        %917 = vmatpush1.msra.mxu0 0.0
        %918 = vmatprep.subr.mxu0 0.0
        %919 = vmatpush1.msra.mxu0 0.0
        %920 = vmatprep.subr.mxu0 0.0
        %921 = vmatpush1.msra.mxu0 0.0
        %922 = vmatprep.subr.mxu0 0.0
        %923 = vmatpush1.msra.mxu0 0.0
        %924 = vmatprep.subr.mxu0 0.0
        %925 = vmatpush1.msra.mxu0 0.0
        %926 = vmatprep.subr.mxu0 0.0
        %927 = vmatpush1.msra.mxu0 0.0
        %928 = vmatprep.mubr.f32.mxu0 0.0
        %929 = vmatmul.mubr.f32.gmra.mrb[0].mxu0 %v862
        %v930 = vpop.f32.mrb[0].mxu0
        %v931 = vadd.f32 0.0, %v930
        %v932 = vpop.f32.mrb[0].mxu0
        %v933 = vadd.f32 0.0, %v932
        %934 = vdwg.mxu0
        %935 = vmatprep.subr.mxu0 0.0
        %936 = vmatpush1.msra.mxu0 %v857
        %937 = vmatprep.subr.mxu0 0.0
        %938 = vmatpush1.msra.mxu0 0.0
        %939 = vmatprep.subr.mxu0 0.0
        %940 = vmatpush1.msra.mxu0 0.0
        %941 = vmatprep.subr.mxu0 0.0
        %942 = vmatpush1.msra.mxu0 0.0
        %943 = vmatprep.subr.mxu0 0.0
        %944 = vmatpush1.msra.mxu0 0.0
        %945 = vmatprep.subr.mxu0 0.0
        %946 = vmatpush1.msra.mxu0 0.0
        %947 = vmatprep.subr.mxu0 0.0
        %948 = vmatpush1.msra.mxu0 0.0
        %949 = vmatprep.subr.mxu0 0.0
        %950 = vmatpush1.msra.mxu0 0.0
        %951 = vmatprep.subr.mxu0 0.0
        %952 = vmatpush1.msra.mxu0 0.0
        %953 = vmatprep.subr.mxu0 0.0
        %954 = vmatpush1.msra.mxu0 0.0
        %955 = vmatprep.subr.mxu0 0.0
        %956 = vmatpush1.msra.mxu0 0.0
        %957 = vmatprep.subr.mxu0 0.0
        %958 = vmatpush1.msra.mxu0 0.0
        %959 = vmatprep.subr.mxu0 0.0
        %960 = vmatpush1.msra.mxu0 0.0
        %961 = vmatprep.subr.mxu0 0.0
        %962 = vmatpush1.msra.mxu0 0.0
        %963 = vmatprep.subr.mxu0 0.0
        %964 = vmatpush1.msra.mxu0 0.0
        %965 = vmatprep.subr.mxu0 0.0
        %966 = vmatpush1.msra.mxu0 0.0
        %967 = vmatprep.subr.mxu0 0.0
        %968 = vmatpush1.msra.mxu0 0.0
        %969 = vmatprep.subr.mxu0 0.0
        %970 = vmatpush1.msra.mxu0 0.0
        %971 = vmatprep.subr.mxu0 0.0
        %972 = vmatpush1.msra.mxu0 0.0
        %973 = vmatprep.subr.mxu0 0.0
        %974 = vmatpush1.msra.mxu0 0.0
        %975 = vmatprep.subr.mxu0 0.0
        %976 = vmatpush1.msra.mxu0 0.0
        %977 = vmatprep.subr.mxu0 0.0
        %978 = vmatpush1.msra.mxu0 0.0
        %979 = vmatprep.subr.mxu0 0.0
        %980 = vmatpush1.msra.mxu0 0.0
        %981 = vmatprep.subr.mxu0 0.0
        %982 = vmatpush1.msra.mxu0 0.0
        %983 = vmatprep.subr.mxu0 0.0
        %984 = vmatpush1.msra.mxu0 0.0
        %985 = vmatprep.subr.mxu0 0.0
        %986 = vmatpush1.msra.mxu0 0.0
        %987 = vmatprep.subr.mxu0 0.0
        %988 = vmatpush1.msra.mxu0 0.0
        %989 = vmatprep.subr.mxu0 0.0
        %990 = vmatpush1.msra.mxu0 0.0
        %991 = vmatprep.subr.mxu0 0.0
        %992 = vmatpush1.msra.mxu0 0.0
        %993 = vmatprep.subr.mxu0 0.0
        %994 = vmatpush1.msra.mxu0 0.0
        %995 = vmatprep.subr.mxu0 0.0
        %996 = vmatpush1.msra.mxu0 0.0
        %997 = vmatprep.subr.mxu0 0.0
        %998 = vmatpush1.msra.mxu0 0.0
        %999 = vmatprep.mubr.f32.mxu0 0.0
        %1000 = vmatmul.mubr.f32.gmra.mrb[0].mxu0 %v862
        %v1001 = vpop.f32.mrb[0].mxu0
        %v1002 = vadd.f32 0.0, %v1001
        %v1003 = vpop.f32.mrb[0].mxu0
        %1004 = vdwg.mxu0
        %v1005 = vadd.f32 %v841, %v931
        %v1006 = vadd.f32 %v842, %v933
        %v1007 = vadd.f32 %v843, %v1002
        %s1008 = scalar_lea.vmem %s1, 40
        %v1009 = vld [vmem:[%s1008] sm:$0xff]
        %1010 = vrot.lane.b32.xlu0 %v202, 108
        %v1011 = vpop.permute.xlu0 %1010
        %1012 = vrot.lane.b32.xlu0 %v203, 108
        %v1013 = vpop.permute.xlu0 %1012
        %1014 = vrot.lane.b32.xlu0 %v204, 108
        %v1015 = vpop.permute.xlu0 %1014
        %1016 = vrot.lane.b32.xlu0 %v205, 108
        %v1017 = vpop.permute.xlu0 %1016
        %vm1018 = vcmask 883712
        %v1019 = vsel %vm1018, %v1011, %v1013
        %v1020 = vsel %vm1018, %v1013, %v1015
        %v1021 = vsel %vm1018, %v1015, %v1017
        %v1026 = vsel %vm227, %v1009, 0
        %1028 = vmatprep.subr.mxu0 %v1020
        %1029 = vmatpush1.msra.mxu0 %v1019
        %1030 = vmatprep.subr.mxu0 0.0
        %1031 = vmatpush1.msra.mxu0 0.0
        %1032 = vmatprep.subr.mxu0 0.0
        %1033 = vmatpush1.msra.mxu0 0.0
        %1034 = vmatprep.subr.mxu0 0.0
        %1035 = vmatpush1.msra.mxu0 0.0
        %1036 = vmatprep.subr.mxu0 0.0
        %1037 = vmatpush1.msra.mxu0 0.0
        %1038 = vmatprep.subr.mxu0 0.0
        %1039 = vmatpush1.msra.mxu0 0.0
        %1040 = vmatprep.subr.mxu0 0.0
        %1041 = vmatpush1.msra.mxu0 0.0
        %1042 = vmatprep.subr.mxu0 0.0
        %1043 = vmatpush1.msra.mxu0 0.0
        %1044 = vmatprep.subr.mxu0 0.0
        %1045 = vmatpush1.msra.mxu0 0.0
        %1046 = vmatprep.subr.mxu0 0.0
        %1047 = vmatpush1.msra.mxu0 0.0
        %1048 = vmatprep.subr.mxu0 0.0
        %1049 = vmatpush1.msra.mxu0 0.0
        %1050 = vmatprep.subr.mxu0 0.0
        %1051 = vmatpush1.msra.mxu0 0.0
        %1052 = vmatprep.subr.mxu0 0.0
        %1053 = vmatpush1.msra.mxu0 0.0
        %1054 = vmatprep.subr.mxu0 0.0
        %1055 = vmatpush1.msra.mxu0 0.0
        %1056 = vmatprep.subr.mxu0 0.0
        %1057 = vmatpush1.msra.mxu0 0.0
        %1058 = vmatprep.subr.mxu0 0.0
        %1059 = vmatpush1.msra.mxu0 0.0
        %1060 = vmatprep.subr.mxu0 0.0
        %1061 = vmatpush1.msra.mxu0 0.0
        %1062 = vmatprep.subr.mxu0 0.0
        %1063 = vmatpush1.msra.mxu0 0.0
        %1064 = vmatprep.subr.mxu0 0.0
        %1065 = vmatpush1.msra.mxu0 0.0
        %1066 = vmatprep.subr.mxu0 0.0
        %1067 = vmatpush1.msra.mxu0 0.0
        %1068 = vmatprep.subr.mxu0 0.0
        %1069 = vmatpush1.msra.mxu0 0.0
        %1070 = vmatprep.subr.mxu0 0.0
        %1071 = vmatpush1.msra.mxu0 0.0
        %1072 = vmatprep.subr.mxu0 0.0
        %1073 = vmatpush1.msra.mxu0 0.0
        %1074 = vmatprep.subr.mxu0 0.0
        %1075 = vmatpush1.msra.mxu0 0.0
        %1076 = vmatprep.subr.mxu0 0.0
        %1077 = vmatpush1.msra.mxu0 0.0
        %1078 = vmatprep.subr.mxu0 0.0
        %1079 = vmatpush1.msra.mxu0 0.0
        %1080 = vmatprep.subr.mxu0 0.0
        %1081 = vmatpush1.msra.mxu0 0.0
        %1082 = vmatprep.subr.mxu0 0.0
        %1083 = vmatpush1.msra.mxu0 0.0
        %1084 = vmatprep.subr.mxu0 0.0
        %1085 = vmatpush1.msra.mxu0 0.0
        %1086 = vmatprep.subr.mxu0 0.0
        %1087 = vmatpush1.msra.mxu0 0.0
        %1088 = vmatprep.subr.mxu0 0.0
        %1089 = vmatpush1.msra.mxu0 0.0
        %1090 = vmatprep.subr.mxu0 0.0
        %1091 = vmatpush1.msra.mxu0 0.0
        %1092 = vmatprep.mubr.f32.mxu0 0.0
        %1093 = vmatmul.mubr.f32.gmra.mrb[0].mxu0 %v1026
        %v1094 = vpop.f32.mrb[0].mxu0
        %v1095 = vadd.f32 0.0, %v1094
        %v1096 = vpop.f32.mrb[0].mxu0
        %v1097 = vadd.f32 0.0, %v1096
        %1098 = vdwg.mxu0
        %1099 = vmatprep.subr.mxu0 0.0
        %1100 = vmatpush1.msra.mxu0 %v1021
        %1101 = vmatprep.subr.mxu0 0.0
        %1102 = vmatpush1.msra.mxu0 0.0
        %1103 = vmatprep.subr.mxu0 0.0
        %1104 = vmatpush1.msra.mxu0 0.0
        %1105 = vmatprep.subr.mxu0 0.0
        %1106 = vmatpush1.msra.mxu0 0.0
        %1107 = vmatprep.subr.mxu0 0.0
        %1108 = vmatpush1.msra.mxu0 0.0
        %1109 = vmatprep.subr.mxu0 0.0
        %1110 = vmatpush1.msra.mxu0 0.0
        %1111 = vmatprep.subr.mxu0 0.0
        %1112 = vmatpush1.msra.mxu0 0.0
        %1113 = vmatprep.subr.mxu0 0.0
        %1114 = vmatpush1.msra.mxu0 0.0
        %1115 = vmatprep.subr.mxu0 0.0
        %1116 = vmatpush1.msra.mxu0 0.0
        %1117 = vmatprep.subr.mxu0 0.0
        %1118 = vmatpush1.msra.mxu0 0.0
        %1119 = vmatprep.subr.mxu0 0.0
        %1120 = vmatpush1.msra.mxu0 0.0
        %1121 = vmatprep.subr.mxu0 0.0
        %1122 = vmatpush1.msra.mxu0 0.0
        %1123 = vmatprep.subr.mxu0 0.0
        %1124 = vmatpush1.msra.mxu0 0.0
        %1125 = vmatprep.subr.mxu0 0.0
        %1126 = vmatpush1.msra.mxu0 0.0
        %1127 = vmatprep.subr.mxu0 0.0
        %1128 = vmatpush1.msra.mxu0 0.0
        %1129 = vmatprep.subr.mxu0 0.0
        %1130 = vmatpush1.msra.mxu0 0.0
        %1131 = vmatprep.subr.mxu0 0.0
        %1132 = vmatpush1.msra.mxu0 0.0
        %1133 = vmatprep.subr.mxu0 0.0
        %1134 = vmatpush1.msra.mxu0 0.0
        %1135 = vmatprep.subr.mxu0 0.0
        %1136 = vmatpush1.msra.mxu0 0.0
        %1137 = vmatprep.subr.mxu0 0.0
        %1138 = vmatpush1.msra.mxu0 0.0
        %1139 = vmatprep.subr.mxu0 0.0
        %1140 = vmatpush1.msra.mxu0 0.0
        %1141 = vmatprep.subr.mxu0 0.0
        %1142 = vmatpush1.msra.mxu0 0.0
        %1143 = vmatprep.subr.mxu0 0.0
        %1144 = vmatpush1.msra.mxu0 0.0
        %1145 = vmatprep.subr.mxu0 0.0
        %1146 = vmatpush1.msra.mxu0 0.0
        %1147 = vmatprep.subr.mxu0 0.0
        %1148 = vmatpush1.msra.mxu0 0.0
        %1149 = vmatprep.subr.mxu0 0.0
        %1150 = vmatpush1.msra.mxu0 0.0
        %1151 = vmatprep.subr.mxu0 0.0
        %1152 = vmatpush1.msra.mxu0 0.0
        %1153 = vmatprep.subr.mxu0 0.0
        %1154 = vmatpush1.msra.mxu0 0.0
        %1155 = vmatprep.subr.mxu0 0.0
        %1156 = vmatpush1.msra.mxu0 0.0
        %1157 = vmatprep.subr.mxu0 0.0
        %1158 = vmatpush1.msra.mxu0 0.0
        %1159 = vmatprep.subr.mxu0 0.0
        %1160 = vmatpush1.msra.mxu0 0.0
        %1161 = vmatprep.subr.mxu0 0.0
        %1162 = vmatpush1.msra.mxu0 0.0
        %1163 = vmatprep.mubr.f32.mxu0 0.0
        %1164 = vmatmul.mubr.f32.gmra.mrb[0].mxu0 %v1026
        %v1165 = vpop.f32.mrb[0].mxu0
        %v1166 = vadd.f32 0.0, %v1165
        %v1167 = vpop.f32.mrb[0].mxu0
        %1168 = vdwg.mxu0
        %v1169 = vadd.f32 %v1005, %v1095
        %v1170 = vadd.f32 %v1006, %v1097
        %v1171 = vadd.f32 %v1007, %v1166
        %s1172 = scalar_lea.vmem %s1, 48
        %v1173 = vld [vmem:[%s1172] sm:$0xff]
        %1174 = vrot.lane.b32.xlu0 %v202, 92
        %v1175 = vpop.permute.xlu0 %1174
        %1176 = vrot.lane.b32.xlu0 %v203, 92
        %v1177 = vpop.permute.xlu0 %1176
        %1178 = vrot.lane.b32.xlu0 %v204, 92
        %v1179 = vpop.permute.xlu0 %1178
        %1180 = vrot.lane.b32.xlu0 %v205, 92
        %v1181 = vpop.permute.xlu0 %1180
        %vm1182 = vcmask 752640
        %v1183 = vsel %vm1182, %v1175, %v1177
        %v1184 = vsel %vm1182, %v1177, %v1179
        %v1185 = vsel %vm1182, %v1179, %v1181
        %v1190 = vsel %vm227, %v1173, 0
        %1192 = vmatprep.subr.mxu0 %v1184
        %1193 = vmatpush1.msra.mxu0 %v1183
        %1194 = vmatprep.subr.mxu0 0.0
        %1195 = vmatpush1.msra.mxu0 0.0
        %1196 = vmatprep.subr.mxu0 0.0
        %1197 = vmatpush1.msra.mxu0 0.0
        %1198 = vmatprep.subr.mxu0 0.0
        %1199 = vmatpush1.msra.mxu0 0.0
        %1200 = vmatprep.subr.mxu0 0.0
        %1201 = vmatpush1.msra.mxu0 0.0
        %1202 = vmatprep.subr.mxu0 0.0
        %1203 = vmatpush1.msra.mxu0 0.0
        %1204 = vmatprep.subr.mxu0 0.0
        %1205 = vmatpush1.msra.mxu0 0.0
        %1206 = vmatprep.subr.mxu0 0.0
        %1207 = vmatpush1.msra.mxu0 0.0
        %1208 = vmatprep.subr.mxu0 0.0
        %1209 = vmatpush1.msra.mxu0 0.0
        %1210 = vmatprep.subr.mxu0 0.0
        %1211 = vmatpush1.msra.mxu0 0.0
        %1212 = vmatprep.subr.mxu0 0.0
        %1213 = vmatpush1.msra.mxu0 0.0
        %1214 = vmatprep.subr.mxu0 0.0
        %1215 = vmatpush1.msra.mxu0 0.0
        %1216 = vmatprep.subr.mxu0 0.0
        %1217 = vmatpush1.msra.mxu0 0.0
        %1218 = vmatprep.subr.mxu0 0.0
        %1219 = vmatpush1.msra.mxu0 0.0
        %1220 = vmatprep.subr.mxu0 0.0
        %1221 = vmatpush1.msra.mxu0 0.0
        %1222 = vmatprep.subr.mxu0 0.0
        %1223 = vmatpush1.msra.mxu0 0.0
        %1224 = vmatprep.subr.mxu0 0.0
        %1225 = vmatpush1.msra.mxu0 0.0
        %1226 = vmatprep.subr.mxu0 0.0
        %1227 = vmatpush1.msra.mxu0 0.0
        %1228 = vmatprep.subr.mxu0 0.0
        %1229 = vmatpush1.msra.mxu0 0.0
        %1230 = vmatprep.subr.mxu0 0.0
        %1231 = vmatpush1.msra.mxu0 0.0
        %1232 = vmatprep.subr.mxu0 0.0
        %1233 = vmatpush1.msra.mxu0 0.0
        %1234 = vmatprep.subr.mxu0 0.0
        %1235 = vmatpush1.msra.mxu0 0.0
        %1236 = vmatprep.subr.mxu0 0.0
        %1237 = vmatpush1.msra.mxu0 0.0
        %1238 = vmatprep.subr.mxu0 0.0
        %1239 = vmatpush1.msra.mxu0 0.0
        %1240 = vmatprep.subr.mxu0 0.0
        %1241 = vmatpush1.msra.mxu0 0.0
        %1242 = vmatprep.subr.mxu0 0.0
        %1243 = vmatpush1.msra.mxu0 0.0
        %1244 = vmatprep.subr.mxu0 0.0
        %1245 = vmatpush1.msra.mxu0 0.0
        %1246 = vmatprep.subr.mxu0 0.0
        %1247 = vmatpush1.msra.mxu0 0.0
        %1248 = vmatprep.subr.mxu0 0.0
        %1249 = vmatpush1.msra.mxu0 0.0
        %1250 = vmatprep.subr.mxu0 0.0
        %1251 = vmatpush1.msra.mxu0 0.0
        %1252 = vmatprep.subr.mxu0 0.0
        %1253 = vmatpush1.msra.mxu0 0.0
        %1254 = vmatprep.subr.mxu0 0.0
        %1255 = vmatpush1.msra.mxu0 0.0
        %1256 = vmatprep.mubr.f32.mxu0 0.0
        %1257 = vmatmul.mubr.f32.gmra.mrb[0].mxu0 %v1190
        %v1258 = vpop.f32.mrb[0].mxu0
        %v1259 = vadd.f32 0.0, %v1258
        %v1260 = vpop.f32.mrb[0].mxu0
        %v1261 = vadd.f32 0.0, %v1260
        %1262 = vdwg.mxu0
        %1263 = vmatprep.subr.mxu0 0.0
        %1264 = vmatpush1.msra.mxu0 %v1185
        %1265 = vmatprep.subr.mxu0 0.0
        %1266 = vmatpush1.msra.mxu0 0.0
        %1267 = vmatprep.subr.mxu0 0.0
        %1268 = vmatpush1.msra.mxu0 0.0
        %1269 = vmatprep.subr.mxu0 0.0
        %1270 = vmatpush1.msra.mxu0 0.0
        %1271 = vmatprep.subr.mxu0 0.0
        %1272 = vmatpush1.msra.mxu0 0.0
        %1273 = vmatprep.subr.mxu0 0.0
        %1274 = vmatpush1.msra.mxu0 0.0
        %1275 = vmatprep.subr.mxu0 0.0
        %1276 = vmatpush1.msra.mxu0 0.0
        %1277 = vmatprep.subr.mxu0 0.0
        %1278 = vmatpush1.msra.mxu0 0.0
        %1279 = vmatprep.subr.mxu0 0.0
        %1280 = vmatpush1.msra.mxu0 0.0
        %1281 = vmatprep.subr.mxu0 0.0
        %1282 = vmatpush1.msra.mxu0 0.0
        %1283 = vmatprep.subr.mxu0 0.0
        %1284 = vmatpush1.msra.mxu0 0.0
        %1285 = vmatprep.subr.mxu0 0.0
        %1286 = vmatpush1.msra.mxu0 0.0
        %1287 = vmatprep.subr.mxu0 0.0
        %1288 = vmatpush1.msra.mxu0 0.0
        %1289 = vmatprep.subr.mxu0 0.0
        %1290 = vmatpush1.msra.mxu0 0.0
        %1291 = vmatprep.subr.mxu0 0.0
        %1292 = vmatpush1.msra.mxu0 0.0
        %1293 = vmatprep.subr.mxu0 0.0
        %1294 = vmatpush1.msra.mxu0 0.0
        %1295 = vmatprep.subr.mxu0 0.0
        %1296 = vmatpush1.msra.mxu0 0.0
        %1297 = vmatprep.subr.mxu0 0.0
        %1298 = vmatpush1.msra.mxu0 0.0
        %1299 = vmatprep.subr.mxu0 0.0
        %1300 = vmatpush1.msra.mxu0 0.0
        %1301 = vmatprep.subr.mxu0 0.0
        %1302 = vmatpush1.msra.mxu0 0.0
        %1303 = vmatprep.subr.mxu0 0.0
        %1304 = vmatpush1.msra.mxu0 0.0
        %1305 = vmatprep.subr.mxu0 0.0
        %1306 = vmatpush1.msra.mxu0 0.0
        %1307 = vmatprep.subr.mxu0 0.0
        %1308 = vmatpush1.msra.mxu0 0.0
        %1309 = vmatprep.subr.mxu0 0.0
        %1310 = vmatpush1.msra.mxu0 0.0
        %1311 = vmatprep.subr.mxu0 0.0
        %1312 = vmatpush1.msra.mxu0 0.0
        %1313 = vmatprep.subr.mxu0 0.0
        %1314 = vmatpush1.msra.mxu0 0.0
        %1315 = vmatprep.subr.mxu0 0.0
        %1316 = vmatpush1.msra.mxu0 0.0
        %1317 = vmatprep.subr.mxu0 0.0
        %1318 = vmatpush1.msra.mxu0 0.0
        %1319 = vmatprep.subr.mxu0 0.0
        %1320 = vmatpush1.msra.mxu0 0.0
        %1321 = vmatprep.subr.mxu0 0.0
        %1322 = vmatpush1.msra.mxu0 0.0
        %1323 = vmatprep.subr.mxu0 0.0
        %1324 = vmatpush1.msra.mxu0 0.0
        %1325 = vmatprep.subr.mxu0 0.0
        %1326 = vmatpush1.msra.mxu0 0.0
        %1327 = vmatprep.mubr.f32.mxu0 0.0
        %1328 = vmatmul.mubr.f32.gmra.mrb[0].mxu0 %v1190
        %v1329 = vpop.f32.mrb[0].mxu0
        %v1330 = vadd.f32 0.0, %v1329
        %v1331 = vpop.f32.mrb[0].mxu0
        %1332 = vdwg.mxu0
        %v1333 = vadd.f32 %v1169, %v1259
        %v1334 = vadd.f32 %v1170, %v1261
        %v1335 = vadd.f32 %v1171, %v1330
        %s1336 = scalar_lea.vmem %s1, 56
        %v1337 = vld [vmem:[%s1336] sm:$0xff]
        %1338 = vrot.lane.b32.xlu0 %v202, 91
        %v1339 = vpop.permute.xlu0 %1338
        %1340 = vrot.lane.b32.xlu0 %v203, 91
        %v1341 = vpop.permute.xlu0 %1340
        %1342 = vrot.lane.b32.xlu0 %v204, 91
        %v1343 = vpop.permute.xlu0 %1342
        %1344 = vrot.lane.b32.xlu0 %v205, 91
        %v1345 = vpop.permute.xlu0 %1344
        %vm1346 = vcmask 744448
        %v1347 = vsel %vm1346, %v1339, %v1341
        %v1348 = vsel %vm1346, %v1341, %v1343
        %v1349 = vsel %vm1346, %v1343, %v1345
        %v1354 = vsel %vm227, %v1337, 0
        %1356 = vmatprep.subr.mxu0 %v1348
        %1357 = vmatpush1.msra.mxu0 %v1347
        %1358 = vmatprep.subr.mxu0 0.0
        %1359 = vmatpush1.msra.mxu0 0.0
        %1360 = vmatprep.subr.mxu0 0.0
        %1361 = vmatpush1.msra.mxu0 0.0
        %1362 = vmatprep.subr.mxu0 0.0
        %1363 = vmatpush1.msra.mxu0 0.0
        %1364 = vmatprep.subr.mxu0 0.0
        %1365 = vmatpush1.msra.mxu0 0.0
        %1366 = vmatprep.subr.mxu0 0.0
        %1367 = vmatpush1.msra.mxu0 0.0
        %1368 = vmatprep.subr.mxu0 0.0
        %1369 = vmatpush1.msra.mxu0 0.0
        %1370 = vmatprep.subr.mxu0 0.0
        %1371 = vmatpush1.msra.mxu0 0.0
        %1372 = vmatprep.subr.mxu0 0.0
        %1373 = vmatpush1.msra.mxu0 0.0
        %1374 = vmatprep.subr.mxu0 0.0
        %1375 = vmatpush1.msra.mxu0 0.0
        %1376 = vmatprep.subr.mxu0 0.0
        %1377 = vmatpush1.msra.mxu0 0.0
        %1378 = vmatprep.subr.mxu0 0.0
        %1379 = vmatpush1.msra.mxu0 0.0
        %1380 = vmatprep.subr.mxu0 0.0
        %1381 = vmatpush1.msra.mxu0 0.0
        %1382 = vmatprep.subr.mxu0 0.0
        %1383 = vmatpush1.msra.mxu0 0.0
        %1384 = vmatprep.subr.mxu0 0.0
        %1385 = vmatpush1.msra.mxu0 0.0
        %1386 = vmatprep.subr.mxu0 0.0
        %1387 = vmatpush1.msra.mxu0 0.0
        %1388 = vmatprep.subr.mxu0 0.0
        %1389 = vmatpush1.msra.mxu0 0.0
        %1390 = vmatprep.subr.mxu0 0.0
        %1391 = vmatpush1.msra.mxu0 0.0
        %1392 = vmatprep.subr.mxu0 0.0
        %1393 = vmatpush1.msra.mxu0 0.0
        %1394 = vmatprep.subr.mxu0 0.0
        %1395 = vmatpush1.msra.mxu0 0.0
        %1396 = vmatprep.subr.mxu0 0.0
        %1397 = vmatpush1.msra.mxu0 0.0
        %1398 = vmatprep.subr.mxu0 0.0
        %1399 = vmatpush1.msra.mxu0 0.0
        %1400 = vmatprep.subr.mxu0 0.0
        %1401 = vmatpush1.msra.mxu0 0.0
        %1402 = vmatprep.subr.mxu0 0.0
        %1403 = vmatpush1.msra.mxu0 0.0
        %1404 = vmatprep.subr.mxu0 0.0
        %1405 = vmatpush1.msra.mxu0 0.0
        %1406 = vmatprep.subr.mxu0 0.0
        %1407 = vmatpush1.msra.mxu0 0.0
        %1408 = vmatprep.subr.mxu0 0.0
        %1409 = vmatpush1.msra.mxu0 0.0
        %1410 = vmatprep.subr.mxu0 0.0
        %1411 = vmatpush1.msra.mxu0 0.0
        %1412 = vmatprep.subr.mxu0 0.0
        %1413 = vmatpush1.msra.mxu0 0.0
        %1414 = vmatprep.subr.mxu0 0.0
        %1415 = vmatpush1.msra.mxu0 0.0
        %1416 = vmatprep.subr.mxu0 0.0
        %1417 = vmatpush1.msra.mxu0 0.0
        %1418 = vmatprep.subr.mxu0 0.0
        %1419 = vmatpush1.msra.mxu0 0.0
        %1420 = vmatprep.mubr.f32.mxu0 0.0
        %1421 = vmatmul.mubr.f32.gmra.mrb[0].mxu0 %v1354
        %v1422 = vpop.f32.mrb[0].mxu0
        %v1423 = vadd.f32 0.0, %v1422
        %v1424 = vpop.f32.mrb[0].mxu0
        %v1425 = vadd.f32 0.0, %v1424
        %1426 = vdwg.mxu0
        %1427 = vmatprep.subr.mxu0 0.0
        %1428 = vmatpush1.msra.mxu0 %v1349
        %1429 = vmatprep.subr.mxu0 0.0
        %1430 = vmatpush1.msra.mxu0 0.0
        %1431 = vmatprep.subr.mxu0 0.0
        %1432 = vmatpush1.msra.mxu0 0.0
        %1433 = vmatprep.subr.mxu0 0.0
        %1434 = vmatpush1.msra.mxu0 0.0
        %1435 = vmatprep.subr.mxu0 0.0
        %1436 = vmatpush1.msra.mxu0 0.0
        %1437 = vmatprep.subr.mxu0 0.0
        %1438 = vmatpush1.msra.mxu0 0.0
        %1439 = vmatprep.subr.mxu0 0.0
        %1440 = vmatpush1.msra.mxu0 0.0
        %1441 = vmatprep.subr.mxu0 0.0
        %1442 = vmatpush1.msra.mxu0 0.0
        %1443 = vmatprep.subr.mxu0 0.0
        %1444 = vmatpush1.msra.mxu0 0.0
        %1445 = vmatprep.subr.mxu0 0.0
        %1446 = vmatpush1.msra.mxu0 0.0
        %1447 = vmatprep.subr.mxu0 0.0
        %1448 = vmatpush1.msra.mxu0 0.0
        %1449 = vmatprep.subr.mxu0 0.0
        %1450 = vmatpush1.msra.mxu0 0.0
        %1451 = vmatprep.subr.mxu0 0.0
        %1452 = vmatpush1.msra.mxu0 0.0
        %1453 = vmatprep.subr.mxu0 0.0
        %1454 = vmatpush1.msra.mxu0 0.0
        %1455 = vmatprep.subr.mxu0 0.0
        %1456 = vmatpush1.msra.mxu0 0.0
        %1457 = vmatprep.subr.mxu0 0.0
        %1458 = vmatpush1.msra.mxu0 0.0
        %1459 = vmatprep.subr.mxu0 0.0
        %1460 = vmatpush1.msra.mxu0 0.0
        %1461 = vmatprep.subr.mxu0 0.0
        %1462 = vmatpush1.msra.mxu0 0.0
        %1463 = vmatprep.subr.mxu0 0.0
        %1464 = vmatpush1.msra.mxu0 0.0
        %1465 = vmatprep.subr.mxu0 0.0
        %1466 = vmatpush1.msra.mxu0 0.0
        %1467 = vmatprep.subr.mxu0 0.0
        %1468 = vmatpush1.msra.mxu0 0.0
        %1469 = vmatprep.subr.mxu0 0.0
        %1470 = vmatpush1.msra.mxu0 0.0
        %1471 = vmatprep.subr.mxu0 0.0
        %1472 = vmatpush1.msra.mxu0 0.0
        %1473 = vmatprep.subr.mxu0 0.0
        %1474 = vmatpush1.msra.mxu0 0.0
        %1475 = vmatprep.subr.mxu0 0.0
        %1476 = vmatpush1.msra.mxu0 0.0
        %1477 = vmatprep.subr.mxu0 0.0
        %1478 = vmatpush1.msra.mxu0 0.0
        %1479 = vmatprep.subr.mxu0 0.0
        %1480 = vmatpush1.msra.mxu0 0.0
        %1481 = vmatprep.subr.mxu0 0.0
        %1482 = vmatpush1.msra.mxu0 0.0
        %1483 = vmatprep.subr.mxu0 0.0
        %1484 = vmatpush1.msra.mxu0 0.0
        %1485 = vmatprep.subr.mxu0 0.0
        %1486 = vmatpush1.msra.mxu0 0.0
        %1487 = vmatprep.subr.mxu0 0.0
        %1488 = vmatpush1.msra.mxu0 0.0
        %1489 = vmatprep.subr.mxu0 0.0
        %1490 = vmatpush1.msra.mxu0 0.0
        %1491 = vmatprep.mubr.f32.mxu0 0.0
        %1492 = vmatmul.mubr.f32.gmra.mrb[0].mxu0 %v1354
        %v1493 = vpop.f32.mrb[0].mxu0
        %v1494 = vadd.f32 0.0, %v1493
        %v1495 = vpop.f32.mrb[0].mxu0
        %1496 = vdwg.mxu0
        %v1497 = vadd.f32 %v1333, %v1423
        %v1498 = vadd.f32 %v1334, %v1425
        %v1499 = vadd.f32 %v1335, %v1494
        %s1500 = scalar_lea.vmem %s1, 64
        %v1501 = vld [vmem:[%s1500] sm:$0xff]
        %1502 = vrot.lane.b32.xlu0 %v202, 90
        %v1503 = vpop.permute.xlu0 %1502
        %1504 = vrot.lane.b32.xlu0 %v203, 90
        %v1505 = vpop.permute.xlu0 %1504
        %1506 = vrot.lane.b32.xlu0 %v204, 90
        %v1507 = vpop.permute.xlu0 %1506
        %1508 = vrot.lane.b32.xlu0 %v205, 90
        %v1509 = vpop.permute.xlu0 %1508
        %vm1510 = vcmask 736256
        %v1511 = vsel %vm1510, %v1503, %v1505
        %v1512 = vsel %vm1510, %v1505, %v1507
        %v1513 = vsel %vm1510, %v1507, %v1509
        %v1518 = vsel %vm227, %v1501, 0
        %1520 = vmatprep.subr.mxu0 %v1512
        %1521 = vmatpush1.msra.mxu0 %v1511
        %1522 = vmatprep.subr.mxu0 0.0
        %1523 = vmatpush1.msra.mxu0 0.0
        %1524 = vmatprep.subr.mxu0 0.0
        %1525 = vmatpush1.msra.mxu0 0.0
        %1526 = vmatprep.subr.mxu0 0.0
        %1527 = vmatpush1.msra.mxu0 0.0
        %1528 = vmatprep.subr.mxu0 0.0
        %1529 = vmatpush1.msra.mxu0 0.0
        %1530 = vmatprep.subr.mxu0 0.0
        %1531 = vmatpush1.msra.mxu0 0.0
        %1532 = vmatprep.subr.mxu0 0.0
        %1533 = vmatpush1.msra.mxu0 0.0
        %1534 = vmatprep.subr.mxu0 0.0
        %1535 = vmatpush1.msra.mxu0 0.0
        %1536 = vmatprep.subr.mxu0 0.0
        %1537 = vmatpush1.msra.mxu0 0.0
        %1538 = vmatprep.subr.mxu0 0.0
        %1539 = vmatpush1.msra.mxu0 0.0
        %1540 = vmatprep.subr.mxu0 0.0
        %1541 = vmatpush1.msra.mxu0 0.0
        %1542 = vmatprep.subr.mxu0 0.0
        %1543 = vmatpush1.msra.mxu0 0.0
        %1544 = vmatprep.subr.mxu0 0.0
        %1545 = vmatpush1.msra.mxu0 0.0
        %1546 = vmatprep.subr.mxu0 0.0
        %1547 = vmatpush1.msra.mxu0 0.0
        %1548 = vmatprep.subr.mxu0 0.0
        %1549 = vmatpush1.msra.mxu0 0.0
        %1550 = vmatprep.subr.mxu0 0.0
        %1551 = vmatpush1.msra.mxu0 0.0
        %1552 = vmatprep.subr.mxu0 0.0
        %1553 = vmatpush1.msra.mxu0 0.0
        %1554 = vmatprep.subr.mxu0 0.0
        %1555 = vmatpush1.msra.mxu0 0.0
        %1556 = vmatprep.subr.mxu0 0.0
        %1557 = vmatpush1.msra.mxu0 0.0
        %1558 = vmatprep.subr.mxu0 0.0
        %1559 = vmatpush1.msra.mxu0 0.0
        %1560 = vmatprep.subr.mxu0 0.0
        %1561 = vmatpush1.msra.mxu0 0.0
        %1562 = vmatprep.subr.mxu0 0.0
        %1563 = vmatpush1.msra.mxu0 0.0
        %1564 = vmatprep.subr.mxu0 0.0
        %1565 = vmatpush1.msra.mxu0 0.0
        %1566 = vmatprep.subr.mxu0 0.0
        %1567 = vmatpush1.msra.mxu0 0.0
        %1568 = vmatprep.subr.mxu0 0.0
        %1569 = vmatpush1.msra.mxu0 0.0
        %1570 = vmatprep.subr.mxu0 0.0
        %1571 = vmatpush1.msra.mxu0 0.0
        %1572 = vmatprep.subr.mxu0 0.0
        %1573 = vmatpush1.msra.mxu0 0.0
        %1574 = vmatprep.subr.mxu0 0.0
        %1575 = vmatpush1.msra.mxu0 0.0
        %1576 = vmatprep.subr.mxu0 0.0
        %1577 = vmatpush1.msra.mxu0 0.0
        %1578 = vmatprep.subr.mxu0 0.0
        %1579 = vmatpush1.msra.mxu0 0.0
        %1580 = vmatprep.subr.mxu0 0.0
        %1581 = vmatpush1.msra.mxu0 0.0
        %1582 = vmatprep.subr.mxu0 0.0
        %1583 = vmatpush1.msra.mxu0 0.0
        %1584 = vmatprep.mubr.f32.mxu0 0.0
        %1585 = vmatmul.mubr.f32.gmra.mrb[0].mxu0 %v1518
        %v1586 = vpop.f32.mrb[0].mxu0
        %v1587 = vadd.f32 0.0, %v1586
        %v1588 = vpop.f32.mrb[0].mxu0
        %v1589 = vadd.f32 0.0, %v1588
        %1590 = vdwg.mxu0
        %1591 = vmatprep.subr.mxu0 0.0
        %1592 = vmatpush1.msra.mxu0 %v1513
        %1593 = vmatprep.subr.mxu0 0.0
        %1594 = vmatpush1.msra.mxu0 0.0
        %1595 = vmatprep.subr.mxu0 0.0
        %1596 = vmatpush1.msra.mxu0 0.0
        %1597 = vmatprep.subr.mxu0 0.0
        %1598 = vmatpush1.msra.mxu0 0.0
        %1599 = vmatprep.subr.mxu0 0.0
        %1600 = vmatpush1.msra.mxu0 0.0
        %1601 = vmatprep.subr.mxu0 0.0
        %1602 = vmatpush1.msra.mxu0 0.0
        %1603 = vmatprep.subr.mxu0 0.0
        %1604 = vmatpush1.msra.mxu0 0.0
        %1605 = vmatprep.subr.mxu0 0.0
        %1606 = vmatpush1.msra.mxu0 0.0
        %1607 = vmatprep.subr.mxu0 0.0
        %1608 = vmatpush1.msra.mxu0 0.0
        %1609 = vmatprep.subr.mxu0 0.0
        %1610 = vmatpush1.msra.mxu0 0.0
        %1611 = vmatprep.subr.mxu0 0.0
        %1612 = vmatpush1.msra.mxu0 0.0
        %1613 = vmatprep.subr.mxu0 0.0
        %1614 = vmatpush1.msra.mxu0 0.0
        %1615 = vmatprep.subr.mxu0 0.0
        %1616 = vmatpush1.msra.mxu0 0.0
        %1617 = vmatprep.subr.mxu0 0.0
        %1618 = vmatpush1.msra.mxu0 0.0
        %1619 = vmatprep.subr.mxu0 0.0
        %1620 = vmatpush1.msra.mxu0 0.0
        %1621 = vmatprep.subr.mxu0 0.0
        %1622 = vmatpush1.msra.mxu0 0.0
        %1623 = vmatprep.subr.mxu0 0.0
        %1624 = vmatpush1.msra.mxu0 0.0
        %1625 = vmatprep.subr.mxu0 0.0
        %1626 = vmatpush1.msra.mxu0 0.0
        %1627 = vmatprep.subr.mxu0 0.0
        %1628 = vmatpush1.msra.mxu0 0.0
        %1629 = vmatprep.subr.mxu0 0.0
        %1630 = vmatpush1.msra.mxu0 0.0
        %1631 = vmatprep.subr.mxu0 0.0
        %1632 = vmatpush1.msra.mxu0 0.0
        %1633 = vmatprep.subr.mxu0 0.0
        %1634 = vmatpush1.msra.mxu0 0.0
        %1635 = vmatprep.subr.mxu0 0.0
        %1636 = vmatpush1.msra.mxu0 0.0
        %1637 = vmatprep.subr.mxu0 0.0
        %1638 = vmatpush1.msra.mxu0 0.0
        %1639 = vmatprep.subr.mxu0 0.0
        %1640 = vmatpush1.msra.mxu0 0.0
        %1641 = vmatprep.subr.mxu0 0.0
        %1642 = vmatpush1.msra.mxu0 0.0
        %1643 = vmatprep.subr.mxu0 0.0
        %1644 = vmatpush1.msra.mxu0 0.0
        %1645 = vmatprep.subr.mxu0 0.0
        %1646 = vmatpush1.msra.mxu0 0.0
        %1647 = vmatprep.subr.mxu0 0.0
        %1648 = vmatpush1.msra.mxu0 0.0
        %1649 = vmatprep.subr.mxu0 0.0
        %1650 = vmatpush1.msra.mxu0 0.0
        %1651 = vmatprep.subr.mxu0 0.0
        %1652 = vmatpush1.msra.mxu0 0.0
        %1653 = vmatprep.subr.mxu0 0.0
        %1654 = vmatpush1.msra.mxu0 0.0
        %1655 = vmatprep.mubr.f32.mxu0 0.0
        %1656 = vmatmul.mubr.f32.gmra.mrb[0].mxu0 %v1518
        %v1657 = vpop.f32.mrb[0].mxu0
        %v1658 = vadd.f32 0.0, %v1657
        %v1659 = vpop.f32.mrb[0].mxu0
        %1660 = vdwg.mxu0
        %v1661 = vadd.f32 %v1497, %v1587
        %v1662 = vadd.f32 %v1498, %v1589
        %v1663 = vadd.f32 %v1499, %v1658
        %1665 = vset.pattern.permute.xlu0 0
        %1666 = vperm.xlu0 %1665, %v196
        %v1667 = vpop.permute.xlu0 %1666
        %v1669 = vmul.f32 %v1661, %v1667
        %v1670 = vmul.f32 %v1662, %v1667
        %v1671 = vmul.f32 %v1663, %v1667
        %1673 = vset.pattern.permute.xlu0 0
        %1674 = vperm.xlu0 %1673, %v197
        %v1675 = vpop.permute.xlu0 %1674
        %v1677 = vadd.f32 %v1669, %v1675
        %v1678 = vadd.f32 %v1670, %v1675
        %v1679 = vadd.f32 %v1671, %v1675
        %v1680 = vmax.f32 %v1677, 0.0
        %v1681 = vmax.f32 %v1678, 0.0
        %v1682 = vmax.f32 %v1679, 0.0
        %1683 = vst [vmem:[%s190] sm:$0xff] %v1680
        %1684 = vst [vmem:[%s190 + $0x8] sm:$0xff] %v1681
        %1685 = vst [vmem:[%s190 + $0x10] sm:$0xff] %v1682
        %s1686 = sand.u32 %s115, 1
        %s1687 = scalar_lea.sflag [#allocation3], %s1686
        %s1688 = sand.u32 %s115, 1
        %s1689 = smul.addr %s1688, 24
        %s1690 = scalar_lea.vmem [#allocation2], %s1689
        // Predicated region
        $region37: #{tpu_custom_call.1} parent=35 // pred_check
          %p1691 = pneg %p125
        $region38: #{tpu_custom_call.1} parent=35 // pred_check_branch
          %1693 = sbr.rel (%p1691) target = $region40
        $region39: #{tpu_custom_call.1} parent=35 // pred_region
          %s1695 = ssub.s32 384, 384
          %1696 = vsyncadd %s1687, %s1695
          %s1697 = smul.addr %s18, 3
          %s1698 = smul.addr %s1697, 128
          %s1699 = scalar_lea.hbm %s4, %s1698
          %s1701 = sshll.u32 %s1690, 4
          %s1702 = int_to_ptr.vmem [resolvable:$true] %s1701
          %1704 = dma.vmem_to_hbm [thread:$0]  %s1702, 384, %s1699, %s1687
        $region40: #{tpu_custom_call.1} parent=35 // pred_fallthru
          _
      $region36: #{tpu_custom_call.1} parent=5 // pred_fallthru
        _
      %p1705 = scmp.le.s32.totalorder 2, %s13
      // Predicated region
      $region41: #{tpu_custom_call.1} parent=5 // pred_check
        %p1706 = pneg %p1705
      $region42: #{tpu_custom_call.1} parent=5 // pred_check_branch
        %1708 = sbr.rel (%p1706) target = $region44
      $region43: #{tpu_custom_call.1} parent=5 // pred_region
        %s1709 = ssub.s32 %s13, 2
        // Predicated region
        $region45: #{tpu_custom_call.1} parent=43 // pred_check
          %p1710 = pneg %p131
        $region46: #{tpu_custom_call.1} parent=43 // pred_check_branch
          %1712 = sbr.rel (%p1710) target = $region48
        $region47: #{tpu_custom_call.1} parent=43 // pred_region
          %s1713 = sand.u32 %s116, 1
          %s1714 = scalar_lea.sflag [#allocation3], %s1713
          %s1715 = sand.u32 %s116, 1
          %s1716 = smul.addr %s1715, 24
          %s1717 = scalar_lea.vmem [#allocation2], %s1716
          %1718 = dma.done %s1714, 384
        $region48: #{tpu_custom_call.1} parent=43 // pred_fallthru
          _
      $region44: #{tpu_custom_call.1} parent=5 // pred_fallthru
        _
    $region6: #{tpu_custom_call.1} parent=1 // loop_footer
      %s17 = sadd.s32 1, %s13
    $region7: #{tpu_custom_call.1} parent=1 // loop_footer_branch
      %12 = sbr.rel target = $region3
    $region8: #{tpu_custom_call.1} parent=1 // loop_exit
      _
    %1719 = vsyncpa [#allocation3], 1
    %s1720 = scalar_lea.sflag [#allocation3], 1
    %1721 = vsyncpa %s1720, 1

</llo_original>
